<compile_context>
chip_gen: v7x
topology: tpu7x:2x2x1
jax: 0.10.0
libtpu: 0.0.40
codegen_flags: <defaults>
</compile_context>

<pallas_src>
import jax
import jax.numpy as jnp
import numpy as np
from jax.experimental import pallas as pl
from jax.experimental.pallas import tpu as pltpu

WEIGHT_DTYPE = jnp.bfloat16

# Kernel parameter order (after visn, pooled). wa's bias is intentionally omitted:
# adding a per-batch constant before a softmax is a mathematical no-op.
PARAM_ORDER = [
    "wa1_v", "wa1_p", "ba1", "wa2_v", "wa2_p", "ba2",   # proj_a GatedTanh(2h -> h), split over concat halves
    "wa_w",                                             # wa: Linear(h -> 1) weight, stored (h, 1)
    "wq1", "bq1", "wq2", "bq2",                         # proj_q GatedTanh(h -> h)
    "wv1", "bv1", "wv2", "bv2",                         # proj_v GatedTanh(h -> h)
    "wh1", "bh1", "wh2", "bh2",                         # proj_h GatedTanh(h -> h)
]


def _round_up(x, m):
    return (x + m - 1) // m * m


def _answer_tiling(num_answers):
    """Returns (n_pad, tile_n). Collapse the answer axis when it fits; else tile evenly."""
    n_pad = _round_up(num_answers, 128)
    if n_pad <= 4096:                 # typical VQA (~3129 answers -> 3200): nn == 1
        return n_pad, n_pad
    tile_n = 2048                     # fallback: grid divides evenly -> full coverage
    return _round_up(num_answers, tile_n), tile_n


def _vmem_limits():
    """Returns (physical VMEM bytes, scoped vmem_limit_bytes to request)."""
    cap = None
    try:
        cap = getattr(pltpu.get_tpu_info(), "vmem_capacity_bytes", None)
    except Exception:
        cap = None
    if not cap:
        return 64 * 1024 * 1024, 48 * 1024 * 1024        # conservative: fits every generation
    cap = int(cap)
    return cap, min(cap - 8 * 1024 * 1024, 104 * 1024 * 1024)


def _gated(x, w1, b1, w2, b2):
    # bf16 operands on the MXU with f32 accumulation; bias/tanh/sigmoid stay f32
    # (v5e has no bf16 VPU/EUP path, and the elementwise work hides under the MXU).
    y = jnp.tanh(jnp.dot(x, w1, preferred_element_type=jnp.float32) + b1)
    g = jax.nn.sigmoid(jnp.dot(x, w2, preferred_element_type=jnp.float32) + b2)
    return y * g


def vqa_attn_kernel(
    visn_ref, pooled_ref,
    wa1_v_ref, wa1_p_ref, ba1_ref, wa2_v_ref, wa2_p_ref, ba2_ref,
    wa_w_ref,
    wq1_ref, bq1_ref, wq2_ref, bq2_ref,
    wv1_ref, bv1_ref, wv2_ref, bv2_ref,
    wh1_ref, bh1_ref, wh2_ref, bh2_ref,
    wout_ref, bout_ref,
    out_ref,
    hh_ref,
):
    tb, o, hid = visn_ref.shape

    # hh only depends on the batch tile, not on the answer tile: compute it once per
    # batch tile (answer-grid index j == 0) and stash it in VMEM scratch.
    @pl.when(pl.program_id(1) == 0)
    def _compute_hidden():
        v3 = visn_ref[...]                                   # (tb, o, hid) bf16
        p = pooled_ref[...]                                  # (tb, hid)    bf16
        v2 = v3.reshape(tb * o, hid)                         # one full-height MXU matmul

        # proj_a on concat([visn, pooled]) == v @ W_v + p @ W_p + b (split-weight form).
        # Sigmoid branch first so its f32 intermediates can die before the tanh branch
        # is materialized (bounds peak compiler VMEM scratch to ~2 tiles, not 3).
        pa2 = jnp.dot(p, wa2_p_ref[...], preferred_element_type=jnp.float32)   # (tb, hid)
        g = jax.nn.sigmoid(
            jnp.dot(v2, wa2_v_ref[...],
                    preferred_element_type=jnp.float32).reshape(tb, o, hid)
            + pa2[:, None, :] + ba2_ref[...][None, :, :])                       # (tb, o, hid) f32
        pa1 = jnp.dot(p, wa1_p_ref[...], preferred_element_type=jnp.float32)
        a3 = jnp.tanh(
            jnp.dot(v2, wa1_v_ref[...],
                    preferred_element_type=jnp.float32).reshape(tb, o, hid)
            + pa1[:, None, :] + ba1_ref[...][None, :, :]) * g                   # (tb, o, hid) f32

        # Attention logits over objects via the MXU; wa bias dropped (softmax-invariant).
        # Exact softmax (no approx reciprocal) — it is hidden under the MXU phase anyway.
        a2 = a3.reshape(tb * o, hid).astype(WEIGHT_DTYPE)
        lg = jnp.dot(a2, wa_w_ref[...],
                     preferred_element_type=jnp.float32).reshape(tb, o, 1)
        m = jnp.max(lg, axis=1, keepdims=True)
        e = jnp.exp(lg - m)
        w = e / jnp.sum(e, axis=1, keepdims=True)             # (tb, o, 1) f32

        # Weighted sum over objects: f32 accumulation of the bf16 visual features.
        weighted_v = jnp.sum(v3.astype(jnp.float32) * w, axis=1)   # (tb, hid) f32

        hq = _gated(p, wq1_ref[...], bq1_ref[...], wq2_ref[...], bq2_ref[...])
        hv = _gated(weighted_v.astype(WEIGHT_DTYPE),
                    wv1_ref[...], bv1_ref[...], wv2_ref[...], bv2_ref[...])
        h = (hq * hv).astype(WEIGHT_DTYPE)
        hh_ref[...] = _gated(h, wh1_ref[...], bh1_ref[...], wh2_ref[...], bh2_ref[...])

    # Lane-dense output tile: (tb, tile_n) with tile_n a multiple of 128.
    out_ref[...] = (
        jnp.dot(hh_ref[...].astype(WEIGHT_DTYPE), wout_ref[...],
                preferred_element_type=jnp.float32)
        + bout_ref[...])


def vqa_model_attn(visn_feats, pooled_output, params, *, interpret=False):
    b, o, hid = visn_feats.shape
    num_answers = int(params["num_answers"])
    n_pad, tile_n = _answer_tiling(num_answers)
    nn = n_pad // tile_n

    vmem_cap, vmem_limit = _vmem_limits()

    # Batch tile: sublane-aligned; split in two whenever possible so the "parallel"
    # batch axis spans both v7x TensorCores; cap by VMEM generation.
    max_tile_b = 256 if vmem_cap >= 100 * 1024 * 1024 else 128
    if b >= 16:
        tile_b = min(max_tile_b, _round_up((b + 1) // 2, 8))
    else:
        tile_b = _round_up(b, 8)
    b_pad = _round_up(b, tile_b)
    nb = b_pad // tile_b

    # bf16 inputs: halves HBM traffic and the double-buffered visn VMEM footprint.
    # TODO(synk): have the upstream LXRT encoder emit bf16 directly to skip this cast.
    visn = visn_feats.astype(WEIGHT_DTYPE)
    pooled = pooled_output.astype(WEIGHT_DTYPE)
    if b_pad != b:
        visn = jnp.pad(visn, ((0, b_pad - b), (0, 0), (0, 0)))
        pooled = jnp.pad(pooled, ((0, b_pad - b), (0, 0)))

    # wout/bout are normally pre-padded in init_params; pad here only as a fallback.
    wout, bout = params["wout"], params["bout"]
    if wout.shape[1] != n_pad:
        wout = jnp.pad(wout, ((0, 0), (0, n_pad - wout.shape[1])))
        bout = jnp.pad(bout, ((0, 0), (0, n_pad - bout.shape[1])))

    weights = [params[k] for k in PARAM_ORDER]

    def _resident(arr):
        # Constant block index across the whole grid -> single buffer is enough
        # (saves a full duplicate copy of every weight in VMEM).
        nd = arr.ndim
        return pl.BlockSpec(arr.shape, lambda i, j, nd=nd: (0,) * nd,
                            pipeline_mode=pl.Buffered(1))

    if nn == 1:   # answer axis collapsed: wout/bout are effectively resident too
        wout_spec = pl.BlockSpec((hid, tile_n), lambda i, j: (0, j),
                                 pipeline_mode=pl.Buffered(1))
        bout_spec = pl.BlockSpec((1, tile_n), lambda i, j: (0, j),
                                 pipeline_mode=pl.Buffered(1))
    else:
        wout_spec = pl.BlockSpec((hid, tile_n), lambda i, j: (0, j))
        bout_spec = pl.BlockSpec((1, tile_n), lambda i, j: (0, j))

    grid_spec = pltpu.PrefetchScalarGridSpec(
        num_scalar_prefetch=0,
        grid=(nb, nn),
        in_specs=(
            [pl.BlockSpec((tile_b, o, hid), lambda i, j: (i, 0, 0)),   # visn: per batch tile
             pl.BlockSpec((tile_b, hid), lambda i, j: (i, 0))]         # pooled: per batch tile
            + [_resident(w) for w in weights]                          # resident bf16 weights / f32 biases
            + [wout_spec, bout_spec]),
        out_specs=pl.BlockSpec((tile_b, tile_n), lambda i, j: (i, j)),
        scratch_shapes=[pltpu.VMEM((tile_b, hid), jnp.float32)],       # hh (persists across answer tiles)
    )

    out = pl.pallas_call(
        vqa_attn_kernel,
        out_shape=jax.ShapeDtypeStruct((b_pad, n_pad), jnp.float32),
        grid_spec=grid_spec,
        compiler_params=pltpu.CompilerParams(
            # Batch axis shards across v7x's two TensorCores; the answer axis (usually a
            # single step) stays sequential because hh is computed at j == 0 and reused.
            dimension_semantics=("parallel", "arbitrary"),
            vmem_limit_bytes=vmem_limit,
        ),
        interpret=interpret,
    )(visn, pooled, *weights, wout, bout)

    return out[:b, :num_answers]


def init_params(key, hid, num_answers):
    def lin(k, fan_in, fan_out):
        kw, kb = jax.random.split(k)
        wgt = jax.random.normal(kw, (fan_in, fan_out), jnp.float32) * 0.05
        bia = jax.random.normal(kb, (1, fan_out), jnp.float32) * 0.05
        return wgt, bia

    keys = jax.random.split(key, 10)
    wa1, ba1 = lin(keys[0], 2 * hid, hid)          # proj_a.w1 (concat(visn, pooled) -> hid)
    wa2, ba2 = lin(keys[1], 2 * hid, hid)          # proj_a.w2
    wa_w, wa_b = lin(keys[2], hid, 1)              # wa: Linear(hid -> 1)
    wq1, bq1 = lin(keys[3], hid, hid)
    wq2, bq2 = lin(keys[4], hid, hid)
    wv1, bv1 = lin(keys[5], hid, hid)
    wv2, bv2 = lin(keys[6], hid, hid)
    wh1, bh1 = lin(keys[7], hid, hid)
    wh2, bh2 = lin(keys[8], hid, hid)
    wout, bout = lin(keys[9], hid, num_answers)

    # Pre-pad the output head lane-dense once, instead of a per-call jnp.pad.
    n_pad, _ = _answer_tiling(num_answers)
    if n_pad != num_answers:
        wout = jnp.pad(wout, ((0, 0), (0, n_pad - num_answers)))
        bout = jnp.pad(bout, ((0, 0), (0, n_pad - num_answers)))

    lo = lambda w: w.astype(WEIGHT_DTYPE)          # bf16 weights, f32 biases
    return {
        "num_answers": num_answers,
        "wa1_v": lo(wa1[:hid]), "wa1_p": lo(wa1[hid:]), "ba1": ba1,
        "wa2_v": lo(wa2[:hid]), "wa2_p": lo(wa2[hid:]), "ba2": ba2,
        "wa_w": lo(wa_w), "wa_b": wa_b,            # wa_w stored (hid, 1); wa_b only used by the reference
        "wq1": lo(wq1), "bq1": bq1, "wq2": lo(wq2), "bq2": bq2,
        "wv1": lo(wv1), "bv1": bv1, "wv2": lo(wv2), "bv2": bv2,
        "wh1": lo(wh1), "bh1": bh1, "wh2": lo(wh2), "bh2": bh2,
        "wout": lo(wout), "bout": bout,
    }


def ref_forward(v, p, params):
    # Pure-JAX reference mirroring the PyTorch forward, in f32 math on the same
    # quantized (bf16) inputs/weights the kernel sees. Includes the wa bias (it cancels
    # in softmax). Returns the padded answer width; caller slices to num_answers.
    f32 = lambda a: a.astype(jnp.float32)
    v = f32(v.astype(WEIGHT_DTYPE))
    p = f32(p.astype(WEIGHT_DTYPE))

    def gated(x, w1, b1, w2, b2):
        return jnp.tanh(x @ f32(w1) + b1) * jax.nn.sigmoid(x @ f32(w2) + b2)

    b, o, hid = v.shape
    cat = jnp.concatenate([v, jnp.broadcast_to(p[:, None, :], (b, o, hid))], axis=-1)
    wa1 = jnp.concatenate([f32(params["wa1_v"]), f32(params["wa1_p"])], axis=0)
    wa2 = jnp.concatenate([f32(params["wa2_v"]), f32(params["wa2_p"])], axis=0)
    a = jnp.tanh(cat @ wa1 + params["ba1"]) * jax.nn.sigmoid(cat @ wa2 + params["ba2"])
    logits = a @ f32(params["wa_w"]) + params["wa_b"]        # (b, o, 1)
    w = jax.nn.softmax(logits, axis=1)                       # softmax over objects
    weighted_v = jnp.einsum("boh,boj->bh", v, w)             # (b, hid)
    h = (gated(p, params["wq1"], params["bq1"], params["wq2"], params["bq2"])
         * gated(weighted_v, params["wv1"], params["bv1"], params["wv2"], params["bv2"]))
    hh = gated(h, params["wh1"], params["bh1"], params["wh2"], params["bh2"])
    return hh @ f32(params["wout"]) + params["bout"]


if __name__ == "__main__":
    b, o, hid, num_answers = 2, 8, 32, 16
    key = jax.random.PRNGKey(0)
    k_v, k_p, k_par = jax.random.split(key, 3)

    # Stand-ins for LXRTEncoder outputs: visual features and pooled sentence feature.
    visn_feats = jax.random.normal(k_v, (b, o, hid), jnp.float32)
    pooled_output = jax.random.normal(k_p, (b, hid), jnp.float32)
    params = init_params(k_par, hid, num_answers)

    out = vqa_model_attn(visn_feats, pooled_output, params)
    out = jax.block_until_ready(out)

    ref = ref_forward(visn_feats, pooled_output, params)[:, :num_answers]
    # bf16 weight/activation casts => loosened tolerances.
    np.testing.assert_allclose(np.asarray(out), np.asarray(ref), rtol=3e-2, atol=5e-3)

    print("KERNEL_OK")
</pallas_src>

<mosaic_0001>
module attributes {stable_mosaic.version = 11 : i64} {
  func.func @vqa_attn_kernel(%arg0: i32, %arg1: i32, %arg2: memref<8x8x32xbf16, #tpu.memory_space<vmem>>, %arg3: memref<8x32xbf16, #tpu.memory_space<vmem>>, %arg4: memref<32x32xbf16, #tpu.memory_space<vmem>>, %arg5: memref<32x32xbf16, #tpu.memory_space<vmem>>, %arg6: memref<1x32xf32, #tpu.memory_space<vmem>>, %arg7: memref<32x32xbf16, #tpu.memory_space<vmem>>, %arg8: memref<32x32xbf16, #tpu.memory_space<vmem>>, %arg9: memref<1x32xf32, #tpu.memory_space<vmem>>, %arg10: memref<32x1xbf16, #tpu.memory_space<vmem>>, %arg11: memref<32x32xbf16, #tpu.memory_space<vmem>>, %arg12: memref<1x32xf32, #tpu.memory_space<vmem>>, %arg13: memref<32x32xbf16, #tpu.memory_space<vmem>>, %arg14: memref<1x32xf32, #tpu.memory_space<vmem>>, %arg15: memref<32x32xbf16, #tpu.memory_space<vmem>>, %arg16: memref<1x32xf32, #tpu.memory_space<vmem>>, %arg17: memref<32x32xbf16, #tpu.memory_space<vmem>>, %arg18: memref<1x32xf32, #tpu.memory_space<vmem>>, %arg19: memref<32x32xbf16, #tpu.memory_space<vmem>>, %arg20: memref<1x32xf32, #tpu.memory_space<vmem>>, %arg21: memref<32x32xbf16, #tpu.memory_space<vmem>>, %arg22: memref<1x32xf32, #tpu.memory_space<vmem>>, %arg23: memref<32x128xbf16, #tpu.memory_space<vmem>>, %arg24: memref<1x128xf32, #tpu.memory_space<vmem>>, %arg25: memref<8x128xf32, #tpu.memory_space<vmem>>, %arg26: memref<8x32xf32, #tpu.memory_space<vmem>>) attributes {dimension_semantics = [#tpu.dimension_semantics<parallel>, #tpu.dimension_semantics<arbitrary>], iteration_bounds = array<i64: 1, 1>, scalar_prefetch = 0 : i64, scratch_operands = 1 : i64, tpu.core_type = #tpu.core_type<tc>, window_params = [{transform_indices = @transform_0, window_bounds = array<i64: 8, 8, 32>}, {transform_indices = @transform_1, window_bounds = array<i64: 8, 32>}, {pipeline_mode = #tpu.pipeline_mode<synchronous>, transform_indices = @transform_2, window_bounds = array<i64: 32, 32>}, {pipeline_mode = #tpu.pipeline_mode<synchronous>, transform_indices = @transform_3, window_bounds = array<i64: 32, 32>}, {pipeline_mode = #tpu.pipeline_mode<synchronous>, transform_indices = @transform_4, window_bounds = array<i64: 1, 32>}, {pipeline_mode = #tpu.pipeline_mode<synchronous>, transform_indices = @transform_5, window_bounds = array<i64: 32, 32>}, {pipeline_mode = #tpu.pipeline_mode<synchronous>, transform_indices = @transform_6, window_bounds = array<i64: 32, 32>}, {pipeline_mode = #tpu.pipeline_mode<synchronous>, transform_indices = @transform_7, window_bounds = array<i64: 1, 32>}, {pipeline_mode = #tpu.pipeline_mode<synchronous>, transform_indices = @transform_8, window_bounds = array<i64: 32, 1>}, {pipeline_mode = #tpu.pipeline_mode<synchronous>, transform_indices = @transform_9, window_bounds = array<i64: 32, 32>}, {pipeline_mode = #tpu.pipeline_mode<synchronous>, transform_indices = @transform_10, window_bounds = array<i64: 1, 32>}, {pipeline_mode = #tpu.pipeline_mode<synchronous>, transform_indices = @transform_11, window_bounds = array<i64: 32, 32>}, {pipeline_mode = #tpu.pipeline_mode<synchronous>, transform_indices = @transform_12, window_bounds = array<i64: 1, 32>}, {pipeline_mode = #tpu.pipeline_mode<synchronous>, transform_indices = @transform_13, window_bounds = array<i64: 32, 32>}, {pipeline_mode = #tpu.pipeline_mode<synchronous>, transform_indices = @transform_14, window_bounds = array<i64: 1, 32>}, {pipeline_mode = #tpu.pipeline_mode<synchronous>, transform_indices = @transform_15, window_bounds = array<i64: 32, 32>}, {pipeline_mode = #tpu.pipeline_mode<synchronous>, transform_indices = @transform_16, window_bounds = array<i64: 1, 32>}, {pipeline_mode = #tpu.pipeline_mode<synchronous>, transform_indices = @transform_17, window_bounds = array<i64: 32, 32>}, {pipeline_mode = #tpu.pipeline_mode<synchronous>, transform_indices = @transform_18, window_bounds = array<i64: 1, 32>}, {pipeline_mode = #tpu.pipeline_mode<synchronous>, transform_indices = @transform_19, window_bounds = array<i64: 32, 32>}, {pipeline_mode = #tpu.pipeline_mode<synchronous>, transform_indices = @transform_20, window_bounds = array<i64: 1, 32>}, {pipeline_mode = #tpu.pipeline_mode<synchronous>, transform_indices = @transform_21, window_bounds = array<i64: 32, 128>}, {pipeline_mode = #tpu.pipeline_mode<synchronous>, transform_indices = @transform_22, window_bounds = array<i64: 1, 128>}, {transform_indices = @transform_23, window_bounds = array<i64: 8, 128>}]} {
    %c0_i32 = arith.constant 0 : i32
    %0 = arith.cmpi eq, %arg1, %c0_i32 : i32
    %1 = arith.extui %0 : i1 to i32
    %c0_i32_0 = arith.constant 0 : i32
    %2 = arith.cmpi ne, %1, %c0_i32_0 : i32
    scf.if %2 {
      %c0_8 = arith.constant 0 : index
      %c0_9 = arith.constant 0 : index
      %c0_10 = arith.constant 0 : index
      %11 = vector.load %arg2[%c0_8, %c0_9, %c0_10] : memref<8x8x32xbf16, #tpu.memory_space<vmem>>, vector<8x8x32xbf16>
      %c0_11 = arith.constant 0 : index
      %c0_12 = arith.constant 0 : index
      %12 = vector.load %arg3[%c0_11, %c0_12] : memref<8x32xbf16, #tpu.memory_space<vmem>>, vector<8x32xbf16>
      %13 = vector.shape_cast %11 : vector<8x8x32xbf16> to vector<64x32xbf16>
      %c0_13 = arith.constant 0 : index
      %c0_14 = arith.constant 0 : index
      %14 = vector.load %arg8[%c0_13, %c0_14] : memref<32x32xbf16, #tpu.memory_space<vmem>>, vector<32x32xbf16>
      %cst_15 = arith.constant dense<0.000000e+00> : vector<8x32xf32>
      %15 = tpu.matmul %12, %14, %cst_15 {dimension_numbers = #tpu.dot_dimension_numbers<[1], [0], [0], [1], [0, 0, 1, 1], [], []>} : vector<8x32xbf16>, vector<32x32xbf16>, vector<8x32xf32> -> vector<8x32xf32>
      %c0_16 = arith.constant 0 : index
      %c0_17 = arith.constant 0 : index
      %16 = vector.load %arg7[%c0_16, %c0_17] : memref<32x32xbf16, #tpu.memory_space<vmem>>, vector<32x32xbf16>
      %cst_18 = arith.constant dense<0.000000e+00> : vector<64x32xf32>
      %17 = tpu.matmul %13, %16, %cst_18 {dimension_numbers = #tpu.dot_dimension_numbers<[1], [0], [0], [1], [0, 0, 1, 1], [], []>} : vector<64x32xbf16>, vector<32x32xbf16>, vector<64x32xf32> -> vector<64x32xf32>
      %18 = vector.shape_cast %17 : vector<64x32xf32> to vector<8x8x32xf32>
      %19 = vector.shape_cast %15 : vector<8x32xf32> to vector<8x1x32xf32>
      %20 = vector.broadcast %19 : vector<8x1x32xf32> to vector<8x8x32xf32>
      %21 = arith.addf %18, %20 : vector<8x8x32xf32>
      %c0_19 = arith.constant 0 : index
      %c0_20 = arith.constant 0 : index
      %22 = vector.load %arg9[%c0_19, %c0_20] : memref<1x32xf32, #tpu.memory_space<vmem>>, vector<1x32xf32>
      %23 = vector.shape_cast %22 : vector<1x32xf32> to vector<1x1x32xf32>
      %24 = vector.broadcast %23 : vector<1x1x32xf32> to vector<8x8x32xf32>
      %25 = arith.addf %21, %24 : vector<8x8x32xf32>
      %26 = arith.negf %25 : vector<8x8x32xf32>
      %27 = math.exp %26 : vector<8x8x32xf32>
      %cst_21 = arith.constant 1.000000e+00 : f32
      %28 = vector.broadcast %cst_21 : f32 to vector<8x8x32xf32>
      %29 = arith.addf %28, %27 : vector<8x8x32xf32>
      %30 = arith.divf %28, %29 : vector<8x8x32xf32>
      %c0_22 = arith.constant 0 : index
      %c0_23 = arith.constant 0 : index
      %31 = vector.load %arg5[%c0_22, %c0_23] : memref<32x32xbf16, #tpu.memory_space<vmem>>, vector<32x32xbf16>
      %cst_24 = arith.constant dense<0.000000e+00> : vector<8x32xf32>
      %32 = tpu.matmul %12, %31, %cst_24 {dimension_numbers = #tpu.dot_dimension_numbers<[1], [0], [0], [1], [0, 0, 1, 1], [], []>} : vector<8x32xbf16>, vector<32x32xbf16>, vector<8x32xf32> -> vector<8x32xf32>
      %c0_25 = arith.constant 0 : index
      %c0_26 = arith.constant 0 : index
      %33 = vector.load %arg4[%c0_25, %c0_26] : memref<32x32xbf16, #tpu.memory_space<vmem>>, vector<32x32xbf16>
      %cst_27 = arith.constant dense<0.000000e+00> : vector<64x32xf32>
      %34 = tpu.matmul %13, %33, %cst_27 {dimension_numbers = #tpu.dot_dimension_numbers<[1], [0], [0], [1], [0, 0, 1, 1], [], []>} : vector<64x32xbf16>, vector<32x32xbf16>, vector<64x32xf32> -> vector<64x32xf32>
      %35 = vector.shape_cast %34 : vector<64x32xf32> to vector<8x8x32xf32>
      %36 = vector.shape_cast %32 : vector<8x32xf32> to vector<8x1x32xf32>
      %37 = vector.broadcast %36 : vector<8x1x32xf32> to vector<8x8x32xf32>
      %38 = arith.addf %35, %37 : vector<8x8x32xf32>
      %c0_28 = arith.constant 0 : index
      %c0_29 = arith.constant 0 : index
      %39 = vector.load %arg6[%c0_28, %c0_29] : memref<1x32xf32, #tpu.memory_space<vmem>>, vector<1x32xf32>
      %40 = vector.shape_cast %39 : vector<1x32xf32> to vector<1x1x32xf32>
      %41 = vector.broadcast %40 : vector<1x1x32xf32> to vector<8x8x32xf32>
      %42 = arith.addf %38, %41 : vector<8x8x32xf32>
      %43 = math.tanh %42 : vector<8x8x32xf32>
      %44 = arith.mulf %43, %30 : vector<8x8x32xf32>
      %45 = vector.shape_cast %44 : vector<8x8x32xf32> to vector<64x32xf32>
      %46 = arith.truncf %45 : vector<64x32xf32> to vector<64x32xbf16>
      %c0_30 = arith.constant 0 : index
      %c0_31 = arith.constant 0 : index
      %47 = vector.load %arg10[%c0_30, %c0_31] : memref<32x1xbf16, #tpu.memory_space<vmem>>, vector<32x1xbf16>
      %cst_32 = arith.constant dense<0.000000e+00> : vector<64x1xf32>
      %48 = tpu.matmul %46, %47, %cst_32 {dimension_numbers = #tpu.dot_dimension_numbers<[1], [0], [0], [1], [0, 0, 1, 1], [], []>} : vector<64x32xbf16>, vector<32x1xbf16>, vector<64x1xf32> -> vector<64x1xf32>
      %49 = vector.shape_cast %48 : vector<64x1xf32> to vector<8x8x1xf32>
      %cst_33 = arith.constant dense<0xFF800000> : vector<8x1xf32>
      %50 = vector.multi_reduction <maximumf>, %49, %cst_33 [1] : vector<8x8x1xf32> to vector<8x1xf32>
      %51 = vector.shape_cast %50 : vector<8x1xf32> to vector<8x1x1xf32>
      %52 = vector.broadcast %51 : vector<8x1x1xf32> to vector<8x8x1xf32>
      %53 = arith.subf %49, %52 : vector<8x8x1xf32>
      %54 = math.exp %53 : vector<8x8x1xf32>
      %cst_34 = arith.constant dense<0.000000e+00> : vector<8x1xf32>
      %55 = vector.multi_reduction <add>, %54, %cst_34 [1] : vector<8x8x1xf32> to vector<8x1xf32>
      %56 = vector.shape_cast %55 : vector<8x1xf32> to vector<8x1x1xf32>
      %57 = vector.broadcast %56 : vector<8x1x1xf32> to vector<8x8x1xf32>
      %58 = arith.divf %54, %57 : vector<8x8x1xf32>
      %59 = arith.extf %11 : vector<8x8x32xbf16> to vector<8x8x32xf32>
      %60 = vector.broadcast %58 : vector<8x8x1xf32> to vector<8x8x32xf32>
      %61 = arith.mulf %59, %60 : vector<8x8x32xf32>
      %cst_35 = arith.constant dense<0.000000e+00> : vector<8x32xf32>
      %62 = vector.multi_reduction <add>, %61, %cst_35 [1] : vector<8x8x32xf32> to vector<8x32xf32>
      %c0_36 = arith.constant 0 : index
      %c0_37 = arith.constant 0 : index
      %63 = vector.load %arg11[%c0_36, %c0_37] : memref<32x32xbf16, #tpu.memory_space<vmem>>, vector<32x32xbf16>
      %c0_38 = arith.constant 0 : index
      %c0_39 = arith.constant 0 : index
      %64 = vector.load %arg12[%c0_38, %c0_39] : memref<1x32xf32, #tpu.memory_space<vmem>>, vector<1x32xf32>
      %c0_40 = arith.constant 0 : index
      %c0_41 = arith.constant 0 : index
      %65 = vector.load %arg13[%c0_40, %c0_41] : memref<32x32xbf16, #tpu.memory_space<vmem>>, vector<32x32xbf16>
      %c0_42 = arith.constant 0 : index
      %c0_43 = arith.constant 0 : index
      %66 = vector.load %arg14[%c0_42, %c0_43] : memref<1x32xf32, #tpu.memory_space<vmem>>, vector<1x32xf32>
      %cst_44 = arith.constant dense<0.000000e+00> : vector<8x32xf32>
      %67 = tpu.matmul %12, %63, %cst_44 {dimension_numbers = #tpu.dot_dimension_numbers<[1], [0], [0], [1], [0, 0, 1, 1], [], []>} : vector<8x32xbf16>, vector<32x32xbf16>, vector<8x32xf32> -> vector<8x32xf32>
      %68 = vector.broadcast %64 : vector<1x32xf32> to vector<8x32xf32>
      %69 = arith.addf %67, %68 : vector<8x32xf32>
      %70 = math.tanh %69 : vector<8x32xf32>
      %cst_45 = arith.constant dense<0.000000e+00> : vector<8x32xf32>
      %71 = tpu.matmul %12, %65, %cst_45 {dimension_numbers = #tpu.dot_dimension_numbers<[1], [0], [0], [1], [0, 0, 1, 1], [], []>} : vector<8x32xbf16>, vector<32x32xbf16>, vector<8x32xf32> -> vector<8x32xf32>
      %72 = vector.broadcast %66 : vector<1x32xf32> to vector<8x32xf32>
      %73 = arith.addf %71, %72 : vector<8x32xf32>
      %74 = arith.negf %73 : vector<8x32xf32>
      %75 = math.exp %74 : vector<8x32xf32>
      %cst_46 = arith.constant 1.000000e+00 : f32
      %76 = vector.broadcast %cst_46 : f32 to vector<8x32xf32>
      %77 = arith.addf %76, %75 : vector<8x32xf32>
      %78 = arith.divf %76, %77 : vector<8x32xf32>
      %79 = arith.mulf %70, %78 : vector<8x32xf32>
      %80 = arith.truncf %62 : vector<8x32xf32> to vector<8x32xbf16>
      %c0_47 = arith.constant 0 : index
      %c0_48 = arith.constant 0 : index
      %81 = vector.load %arg15[%c0_47, %c0_48] : memref<32x32xbf16, #tpu.memory_space<vmem>>, vector<32x32xbf16>
      %c0_49 = arith.constant 0 : index
      %c0_50 = arith.constant 0 : index
      %82 = vector.load %arg16[%c0_49, %c0_50] : memref<1x32xf32, #tpu.memory_space<vmem>>, vector<1x32xf32>
      %c0_51 = arith.constant 0 : index
      %c0_52 = arith.constant 0 : index
      %83 = vector.load %arg17[%c0_51, %c0_52] : memref<32x32xbf16, #tpu.memory_space<vmem>>, vector<32x32xbf16>
      %c0_53 = arith.constant 0 : index
      %c0_54 = arith.constant 0 : index
      %84 = vector.load %arg18[%c0_53, %c0_54] : memref<1x32xf32, #tpu.memory_space<vmem>>, vector<1x32xf32>
      %cst_55 = arith.constant dense<0.000000e+00> : vector<8x32xf32>
      %85 = tpu.matmul %80, %81, %cst_55 {dimension_numbers = #tpu.dot_dimension_numbers<[1], [0], [0], [1], [0, 0, 1, 1], [], []>} : vector<8x32xbf16>, vector<32x32xbf16>, vector<8x32xf32> -> vector<8x32xf32>
      %86 = vector.broadcast %82 : vector<1x32xf32> to vector<8x32xf32>
      %87 = arith.addf %85, %86 : vector<8x32xf32>
      %88 = math.tanh %87 : vector<8x32xf32>
      %cst_56 = arith.constant dense<0.000000e+00> : vector<8x32xf32>
      %89 = tpu.matmul %80, %83, %cst_56 {dimension_numbers = #tpu.dot_dimension_numbers<[1], [0], [0], [1], [0, 0, 1, 1], [], []>} : vector<8x32xbf16>, vector<32x32xbf16>, vector<8x32xf32> -> vector<8x32xf32>
      %90 = vector.broadcast %84 : vector<1x32xf32> to vector<8x32xf32>
      %91 = arith.addf %89, %90 : vector<8x32xf32>
      %92 = arith.negf %91 : vector<8x32xf32>
      %93 = math.exp %92 : vector<8x32xf32>
      %cst_57 = arith.constant 1.000000e+00 : f32
      %94 = vector.broadcast %cst_57 : f32 to vector<8x32xf32>
      %95 = arith.addf %94, %93 : vector<8x32xf32>
      %96 = arith.divf %94, %95 : vector<8x32xf32>
      %97 = arith.mulf %88, %96 : vector<8x32xf32>
      %98 = arith.mulf %79, %97 : vector<8x32xf32>
      %99 = arith.truncf %98 : vector<8x32xf32> to vector<8x32xbf16>
      %c0_58 = arith.constant 0 : index
      %c0_59 = arith.constant 0 : index
      %100 = vector.load %arg19[%c0_58, %c0_59] : memref<32x32xbf16, #tpu.memory_space<vmem>>, vector<32x32xbf16>
      %c0_60 = arith.constant 0 : index
      %c0_61 = arith.constant 0 : index
      %101 = vector.load %arg20[%c0_60, %c0_61] : memref<1x32xf32, #tpu.memory_space<vmem>>, vector<1x32xf32>
      %c0_62 = arith.constant 0 : index
      %c0_63 = arith.constant 0 : index
      %102 = vector.load %arg21[%c0_62, %c0_63] : memref<32x32xbf16, #tpu.memory_space<vmem>>, vector<32x32xbf16>
      %c0_64 = arith.constant 0 : index
      %c0_65 = arith.constant 0 : index
      %103 = vector.load %arg22[%c0_64, %c0_65] : memref<1x32xf32, #tpu.memory_space<vmem>>, vector<1x32xf32>
      %cst_66 = arith.constant dense<0.000000e+00> : vector<8x32xf32>
      %104 = tpu.matmul %99, %100, %cst_66 {dimension_numbers = #tpu.dot_dimension_numbers<[1], [0], [0], [1], [0, 0, 1, 1], [], []>} : vector<8x32xbf16>, vector<32x32xbf16>, vector<8x32xf32> -> vector<8x32xf32>
      %105 = vector.broadcast %101 : vector<1x32xf32> to vector<8x32xf32>
      %106 = arith.addf %104, %105 : vector<8x32xf32>
      %107 = math.tanh %106 : vector<8x32xf32>
      %cst_67 = arith.constant dense<0.000000e+00> : vector<8x32xf32>
      %108 = tpu.matmul %99, %102, %cst_67 {dimension_numbers = #tpu.dot_dimension_numbers<[1], [0], [0], [1], [0, 0, 1, 1], [], []>} : vector<8x32xbf16>, vector<32x32xbf16>, vector<8x32xf32> -> vector<8x32xf32>
      %109 = vector.broadcast %103 : vector<1x32xf32> to vector<8x32xf32>
      %110 = arith.addf %108, %109 : vector<8x32xf32>
      %111 = arith.negf %110 : vector<8x32xf32>
      %112 = math.exp %111 : vector<8x32xf32>
      %cst_68 = arith.constant 1.000000e+00 : f32
      %113 = vector.broadcast %cst_68 : f32 to vector<8x32xf32>
      %114 = arith.addf %113, %112 : vector<8x32xf32>
      %115 = arith.divf %113, %114 : vector<8x32xf32>
      %116 = arith.mulf %107, %115 : vector<8x32xf32>
      %c0_69 = arith.constant 0 : index
      %c0_70 = arith.constant 0 : index
      %117 = vector.load %arg26[%c0_69, %c0_70] : memref<8x32xf32, #tpu.memory_space<vmem>>, vector<8x32xf32>
      tpu.vector_store %arg26[%c0_69, %c0_70], %116 {strides = array<i32>} : memref<8x32xf32, #tpu.memory_space<vmem>>, vector<8x32xf32>,
    } else {
    }
    %c0 = arith.constant 0 : index
    %c0_1 = arith.constant 0 : index
    %3 = vector.load %arg26[%c0, %c0_1] : memref<8x32xf32, #tpu.memory_space<vmem>>, vector<8x32xf32>
    %4 = arith.truncf %3 : vector<8x32xf32> to vector<8x32xbf16>
    %c0_2 = arith.constant 0 : index
    %c0_3 = arith.constant 0 : index
    %5 = vector.load %arg23[%c0_2, %c0_3] : memref<32x128xbf16, #tpu.memory_space<vmem>>, vector<32x128xbf16>
    %cst = arith.constant dense<0.000000e+00> : vector<8x128xf32>
    %6 = tpu.matmul %4, %5, %cst {dimension_numbers = #tpu.dot_dimension_numbers<[1], [0], [0], [1], [0, 0, 1, 1], [], []>} : vector<8x32xbf16>, vector<32x128xbf16>, vector<8x128xf32> -> vector<8x128xf32>
    %c0_4 = arith.constant 0 : index
    %c0_5 = arith.constant 0 : index
    %7 = vector.load %arg24[%c0_4, %c0_5] : memref<1x128xf32, #tpu.memory_space<vmem>>, vector<1x128xf32>
    %8 = vector.broadcast %7 : vector<1x128xf32> to vector<8x128xf32>
    %9 = arith.addf %6, %8 : vector<8x128xf32>
    %c0_6 = arith.constant 0 : index
    %c0_7 = arith.constant 0 : index
    %10 = vector.load %arg25[%c0_6, %c0_7] : memref<8x128xf32, #tpu.memory_space<vmem>>, vector<8x128xf32>
    tpu.vector_store %arg25[%c0_6, %c0_7], %9 {strides = array<i32>} : memref<8x128xf32, #tpu.memory_space<vmem>>, vector<8x128xf32>,
    return
  }
  func.func @transform_0(%arg0: i32, %arg1: i32) -> (i32, i32, i32) {
    %c0_i32 = arith.constant 0 : i32
    %c0_i32_0 = arith.constant 0 : i32
    %c0_i32_1 = arith.constant 0 : i32
    return %arg0, %c0_i32, %c0_i32_0 : i32, i32, i32
  }
  func.func @transform_1(%arg0: i32, %arg1: i32) -> (i32, i32) {
    %c0_i32 = arith.constant 0 : i32
    %c0_i32_0 = arith.constant 0 : i32
    return %arg0, %c0_i32 : i32, i32
  }
  func.func @transform_2(%arg0: i32, %arg1: i32) -> (i32, i32) {
    %c0_i32 = arith.constant 0 : i32
    %c0_i32_0 = arith.constant 0 : i32
    %c0_i32_1 = arith.constant 0 : i32
    return %c0_i32, %c0_i32_0 : i32, i32
  }
  func.func @transform_3(%arg0: i32, %arg1: i32) -> (i32, i32) {
    %c0_i32 = arith.constant 0 : i32
    %c0_i32_0 = arith.constant 0 : i32
    %c0_i32_1 = arith.constant 0 : i32
    return %c0_i32, %c0_i32_0 : i32, i32
  }
  func.func @transform_4(%arg0: i32, %arg1: i32) -> (i32, i32) {
    %c0_i32 = arith.constant 0 : i32
    %c0_i32_0 = arith.constant 0 : i32
    %c0_i32_1 = arith.constant 0 : i32
    return %c0_i32, %c0_i32_0 : i32, i32
  }
  func.func @transform_5(%arg0: i32, %arg1: i32) -> (i32, i32) {
    %c0_i32 = arith.constant 0 : i32
    %c0_i32_0 = arith.constant 0 : i32
    %c0_i32_1 = arith.constant 0 : i32
    return %c0_i32, %c0_i32_0 : i32, i32
  }
  func.func @transform_6(%arg0: i32, %arg1: i32) -> (i32, i32) {
    %c0_i32 = arith.constant 0 : i32
    %c0_i32_0 = arith.constant 0 : i32
    %c0_i32_1 = arith.constant 0 : i32
    return %c0_i32, %c0_i32_0 : i32, i32
  }
  func.func @transform_7(%arg0: i32, %arg1: i32) -> (i32, i32) {
    %c0_i32 = arith.constant 0 : i32
    %c0_i32_0 = arith.constant 0 : i32
    %c0_i32_1 = arith.constant 0 : i32
    return %c0_i32, %c0_i32_0 : i32, i32
  }
  func.func @transform_8(%arg0: i32, %arg1: i32) -> (i32, i32) {
    %c0_i32 = arith.constant 0 : i32
    %c0_i32_0 = arith.constant 0 : i32
    %c0_i32_1 = arith.constant 0 : i32
    return %c0_i32, %c0_i32_0 : i32, i32
  }
  func.func @transform_9(%arg0: i32, %arg1: i32) -> (i32, i32) {
    %c0_i32 = arith.constant 0 : i32
    %c0_i32_0 = arith.constant 0 : i32
    %c0_i32_1 = arith.constant 0 : i32
    return %c0_i32, %c0_i32_0 : i32, i32
  }
  func.func @transform_10(%arg0: i32, %arg1: i32) -> (i32, i32) {
    %c0_i32 = arith.constant 0 : i32
    %c0_i32_0 = arith.constant 0 : i32
    %c0_i32_1 = arith.constant 0 : i32
    return %c0_i32, %c0_i32_0 : i32, i32
  }
  func.func @transform_11(%arg0: i32, %arg1: i32) -> (i32, i32) {
    %c0_i32 = arith.constant 0 : i32
    %c0_i32_0 = arith.constant 0 : i32
    %c0_i32_1 = arith.constant 0 : i32
    return %c0_i32, %c0_i32_0 : i32, i32
  }
  func.func @transform_12(%arg0: i32, %arg1: i32) -> (i32, i32) {
    %c0_i32 = arith.constant 0 : i32
    %c0_i32_0 = arith.constant 0 : i32
    %c0_i32_1 = arith.constant 0 : i32
    return %c0_i32, %c0_i32_0 : i32, i32
  }
  func.func @transform_13(%arg0: i32, %arg1: i32) -> (i32, i32) {
    %c0_i32 = arith.constant 0 : i32
    %c0_i32_0 = arith.constant 0 : i32
    %c0_i32_1 = arith.constant 0 : i32
    return %c0_i32, %c0_i32_0 : i32, i32
  }
  func.func @transform_14(%arg0: i32, %arg1: i32) -> (i32, i32) {
    %c0_i32 = arith.constant 0 : i32
    %c0_i32_0 = arith.constant 0 : i32
    %c0_i32_1 = arith.constant 0 : i32
    return %c0_i32, %c0_i32_0 : i32, i32
  }
  func.func @transform_15(%arg0: i32, %arg1: i32) -> (i32, i32) {
    %c0_i32 = arith.constant 0 : i32
    %c0_i32_0 = arith.constant 0 : i32
    %c0_i32_1 = arith.constant 0 : i32
    return %c0_i32, %c0_i32_0 : i32, i32
  }
  func.func @transform_16(%arg0: i32, %arg1: i32) -> (i32, i32) {
    %c0_i32 = arith.constant 0 : i32
    %c0_i32_0 = arith.constant 0 : i32
    %c0_i32_1 = arith.constant 0 : i32
    return %c0_i32, %c0_i32_0 : i32, i32
  }
  func.func @transform_17(%arg0: i32, %arg1: i32) -> (i32, i32) {
    %c0_i32 = arith.constant 0 : i32
    %c0_i32_0 = arith.constant 0 : i32
    %c0_i32_1 = arith.constant 0 : i32
    return %c0_i32, %c0_i32_0 : i32, i32
  }
  func.func @transform_18(%arg0: i32, %arg1: i32) -> (i32, i32) {
    %c0_i32 = arith.constant 0 : i32
    %c0_i32_0 = arith.constant 0 : i32
    %c0_i32_1 = arith.constant 0 : i32
    return %c0_i32, %c0_i32_0 : i32, i32
  }
  func.func @transform_19(%arg0: i32, %arg1: i32) -> (i32, i32) {
    %c0_i32 = arith.constant 0 : i32
    %c0_i32_0 = arith.constant 0 : i32
    %c0_i32_1 = arith.constant 0 : i32
    return %c0_i32, %c0_i32_0 : i32, i32
  }
  func.func @transform_20(%arg0: i32, %arg1: i32) -> (i32, i32) {
    %c0_i32 = arith.constant 0 : i32
    %c0_i32_0 = arith.constant 0 : i32
    %c0_i32_1 = arith.constant 0 : i32
    return %c0_i32, %c0_i32_0 : i32, i32
  }
  func.func @transform_21(%arg0: i32, %arg1: i32) -> (i32, i32) {
    %c0_i32 = arith.constant 0 : i32
    %c0_i32_0 = arith.constant 0 : i32
    return %c0_i32, %arg1 : i32, i32
  }
  func.func @transform_22(%arg0: i32, %arg1: i32) -> (i32, i32) {
    %c0_i32 = arith.constant 0 : i32
    %c0_i32_0 = arith.constant 0 : i32
    return %c0_i32, %arg1 : i32, i32
  }
  func.func @transform_23(%arg0: i32, %arg1: i32) -> (i32, i32) {
    %c0_i32 = arith.constant 0 : i32
    return %arg0, %arg1 : i32, i32
  }
}

</mosaic_0001>

<llo_original>
// kernel: tpu_custom_call.1
$region0: #{tpu_custom_call.1}
  #allocation0 [shape = 'u32[]', space=smem, size = 0x4, offset = 0x4, fixed_abs, tag = 'smem constant byte address 0x4 - core index']
  #allocation1 [shape = 'u32[144,128]{1,0:T(1,128)}', space=vmem, size = 0x12000, scoped, tag = 'internal scratch']
  #allocation2 [shape = 'f32[8,32]{1,0:T(8,128)}', space=vmem, size = 0x1000, scoped, tag = 'scratch operand']
  %s0 = inlined_call_operand.hbm [shape: bf16[8,8,32], index: 0, kind: input, shape index: {}]
  %s1 = inlined_call_operand.hbm [shape: bf16[8,32], index: 1, kind: input, shape index: {}]
  %s2 = inlined_call_operand.vmem [shape: bf16[32,32], index: 2, kind: input, shape index: {}]
  %s3 = inlined_call_operand.hbm [shape: bf16[32,32], index: 3, kind: input, shape index: {}]
  %s4 = inlined_call_operand.hbm [shape: f32[1,32], index: 4, kind: input, shape index: {}]
  %s5 = inlined_call_operand.vmem [shape: bf16[32,32], index: 5, kind: input, shape index: {}]
  %s6 = inlined_call_operand.hbm [shape: bf16[32,32], index: 6, kind: input, shape index: {}]
  %s7 = inlined_call_operand.hbm [shape: f32[1,32], index: 7, kind: input, shape index: {}]
  %s8 = inlined_call_operand.vmem [shape: bf16[32,1], index: 8, kind: input, shape index: {}]
  %s9 = inlined_call_operand.vmem [shape: bf16[32,32], index: 9, kind: input, shape index: {}]
  %s10 = inlined_call_operand.hbm [shape: f32[1,32], index: 10, kind: input, shape index: {}]
  %s11 = inlined_call_operand.hbm [shape: bf16[32,32], index: 11, kind: input, shape index: {}]
  %s12 = inlined_call_operand.hbm [shape: f32[1,32], index: 12, kind: input, shape index: {}]
  %s13 = inlined_call_operand.vmem [shape: bf16[32,32], index: 13, kind: input, shape index: {}]
  %s14 = inlined_call_operand.hbm [shape: f32[1,32], index: 14, kind: input, shape index: {}]
  %s15 = inlined_call_operand.hbm [shape: bf16[32,32], index: 15, kind: input, shape index: {}]
  %s16 = inlined_call_operand.hbm [shape: f32[1,32], index: 16, kind: input, shape index: {}]
  %s17 = inlined_call_operand.vmem [shape: bf16[32,32], index: 17, kind: input, shape index: {}]
  %s18 = inlined_call_operand.hbm [shape: f32[1,32], index: 18, kind: input, shape index: {}]
  %s19 = inlined_call_operand.hbm [shape: bf16[32,32], index: 19, kind: input, shape index: {}]
  %s20 = inlined_call_operand.hbm [shape: f32[1,32], index: 20, kind: input, shape index: {}]
  %s21 = inlined_call_operand.vmem [shape: bf16[32,128], index: 21, kind: input, shape index: {}]
  %s22 = inlined_call_operand.vmem [shape: f32[1,128], index: 22, kind: input, shape index: {}]
  %s23 = inlined_call_operand.hbm [shape: f32[8,128], index: 23, kind: output, shape index: {}]
  %s24 = sld [smem:[#allocation0]]
  $region166: #{tpu_custom_call.1} parent=0
    _
  %s26 = ssub.s32 1, %s24
  %s27 = scalar_select 0, %s26, %s24
  $region1: #{tpu_custom_call.1} parent=0
    #allocation3 [shape = 'u8[16384]{0}', space=vmem, size = 0x4000, scoped, tag = 'input window, operand 0, single buffered']
    #allocation4 [shape = 's32[1]{0}', space=sflag, size = 0x4, scoped, tag = 'scoped memory for tpu_custom_call.1']
    #allocation5 [shape = 's32[1]{0}', space=sflag, size = 0x4, scoped, tag = 'scoped memory for tpu_custom_call.1']
    #allocation6 [shape = 'u8[2048]{0}', space=vmem, size = 0x800, scoped, tag = 'input window, operand 1, single buffered']
    #allocation7 [shape = 's32[1]{0}', space=sflag, size = 0x4, scoped, tag = 'scoped memory for tpu_custom_call.1']
    #allocation8 [shape = 'u8[8192]{0}', space=vmem, size = 0x2000, scoped, tag = 'input window, operand 3, single buffered']
    #allocation9 [shape = 'u8[512]{0}', space=vmem, size = 0x400, scoped, tag = 'input window, operand 4, single buffered']
    #allocation10 [shape = 's32[1]{0}', space=sflag, size = 0x4, scoped, tag = 'scoped memory for tpu_custom_call.1']
    #allocation11 [shape = 'u8[8192]{0}', space=vmem, size = 0x2000, scoped, tag = 'input window, operand 6, single buffered']
    #allocation12 [shape = 'u8[512]{0}', space=vmem, size = 0x400, scoped, tag = 'input window, operand 7, single buffered']
    #allocation13 [shape = 's32[1]{0}', space=sflag, size = 0x4, scoped, tag = 'scoped memory for tpu_custom_call.1']
    #allocation14 [shape = 'u8[512]{0}', space=vmem, size = 0x400, scoped, tag = 'input window, operand 10, single buffered']
    #allocation15 [shape = 'u8[8192]{0}', space=vmem, size = 0x2000, scoped, tag = 'input window, operand 11, single buffered']
    #allocation16 [shape = 's32[1]{0}', space=sflag, size = 0x4, scoped, tag = 'scoped memory for tpu_custom_call.1']
    #allocation17 [shape = 'u8[512]{0}', space=vmem, size = 0x400, scoped, tag = 'input window, operand 12, single buffered']
    #allocation18 [shape = 'u8[512]{0}', space=vmem, size = 0x400, scoped, tag = 'input window, operand 14, single buffered']
    #allocation19 [shape = 's32[1]{0}', space=sflag, size = 0x4, scoped, tag = 'scoped memory for tpu_custom_call.1']
    #allocation20 [shape = 'u8[8192]{0}', space=vmem, size = 0x2000, scoped, tag = 'input window, operand 15, single buffered']
    #allocation21 [shape = 'u8[512]{0}', space=vmem, size = 0x400, scoped, tag = 'input window, operand 16, single buffered']
    #allocation22 [shape = 's32[1]{0}', space=sflag, size = 0x4, scoped, tag = 'scoped memory for tpu_custom_call.1']
    #allocation23 [shape = 'u8[512]{0}', space=vmem, size = 0x400, scoped, tag = 'input window, operand 18, single buffered']
    #allocation24 [shape = 'u8[8192]{0}', space=vmem, size = 0x2000, scoped, tag = 'input window, operand 19, single buffered']
    #allocation25 [shape = 's32[1]{0}', space=sflag, size = 0x4, scoped, tag = 'scoped memory for tpu_custom_call.1']
    #allocation26 [shape = 'u8[512]{0}', space=vmem, size = 0x400, scoped, tag = 'input window, operand 20, single buffered']
    #allocation27 [shape = 'u8[4096]{0}', space=vmem, size = 0x1000, scoped, tag = 'output window, operand 0, single buffered']
    %28 = vsyncpa [#allocation4], 0
    %29 = vsyncpa [#allocation7], 0
    %30 = vsyncpa [#allocation10], 0
    %31 = vsyncpa [#allocation13], 0
    %32 = vsyncpa [#allocation16], 0
    %33 = vsyncpa [#allocation19], 0
    %34 = vsyncpa [#allocation22], 0
    %35 = vsyncpa [#allocation25], 0
    %36 = vsyncpa [#allocation5], 0
    // Predicated region
    $region2: #{tpu_custom_call.1} parent=1 // pred_check
      _
    $region3: #{tpu_custom_call.1} parent=1 // pred_check_branch
      %38 = sbr.rel (0) target = $region5
    $region4: #{tpu_custom_call.1} parent=1 // pred_region
      %s40 = ssub.s32 512, 512
      %41 = vsyncadd [#allocation4], %s40
      %s42 = sshll.u32 [#allocation3], 4
      %s43 = int_to_ptr.vmem [resolvable:$true] %s42
      %48 = dma.hbm_to_vmem [thread:$0]  %s0, 512, %s43, [#allocation4], 64, 64, 4
    $region5: #{tpu_custom_call.1} parent=1 // pred_fallthru
      _
    // Predicated region
    $region6: #{tpu_custom_call.1} parent=1 // pred_check
      _
    $region7: #{tpu_custom_call.1} parent=1 // pred_check_branch
      %50 = sbr.rel (0) target = $region9
    $region8: #{tpu_custom_call.1} parent=1 // pred_region
      %s52 = ssub.s32 64, 64
      %53 = vsyncadd [#allocation7], %s52
      %s55 = sshll.u32 [#allocation6], 4
      %s56 = int_to_ptr.vmem [resolvable:$true] %s55
      %58 = dma.hbm_to_vmem [thread:$0]  %s1, 64, %s56, [#allocation7]
    $region9: #{tpu_custom_call.1} parent=1 // pred_fallthru
      _
    // Predicated region
    $region10: #{tpu_custom_call.1} parent=1 // pred_check
      _
    $region11: #{tpu_custom_call.1} parent=1 // pred_check_branch
      %60 = sbr.rel (0) target = $region13
    $region12: #{tpu_custom_call.1} parent=1 // pred_region
      _
    $region13: #{tpu_custom_call.1} parent=1 // pred_fallthru
      _
    // Predicated region
    $region14: #{tpu_custom_call.1} parent=1 // pred_check
      _
    $region15: #{tpu_custom_call.1} parent=1 // pred_check_branch
      %62 = sbr.rel (0) target = $region17
    $region16: #{tpu_custom_call.1} parent=1 // pred_region
      %s64 = ssub.s32 256, 256
      %65 = vsyncadd [#allocation7], %s64
      %s66 = sshll.u32 [#allocation8], 4
      %s67 = int_to_ptr.vmem [resolvable:$true] %s66
      %72 = dma.hbm_to_vmem [thread:$0]  %s3, 256, %s67, [#allocation7], 64, 64, 4
    $region17: #{tpu_custom_call.1} parent=1 // pred_fallthru
      _
    // Predicated region
    $region18: #{tpu_custom_call.1} parent=1 // pred_check
      _
    $region19: #{tpu_custom_call.1} parent=1 // pred_check_branch
      %74 = sbr.rel (0) target = $region21
    $region20: #{tpu_custom_call.1} parent=1 // pred_region
      %s76 = ssub.s32 16, 16
      %77 = vsyncadd [#allocation10], %s76
      %s79 = sshll.u32 [#allocation9], 4
      %s80 = int_to_ptr.vmem [resolvable:$true] %s79
      %82 = dma.hbm_to_vmem [thread:$0]  %s4, 16, %s80, [#allocation10]
    $region21: #{tpu_custom_call.1} parent=1 // pred_fallthru
      _
    // Predicated region
    $region22: #{tpu_custom_call.1} parent=1 // pred_check
      _
    $region23: #{tpu_custom_call.1} parent=1 // pred_check_branch
      %84 = sbr.rel (0) target = $region25
    $region24: #{tpu_custom_call.1} parent=1 // pred_region
      _
    $region25: #{tpu_custom_call.1} parent=1 // pred_fallthru
      _
    // Predicated region
    $region26: #{tpu_custom_call.1} parent=1 // pred_check
      _
    $region27: #{tpu_custom_call.1} parent=1 // pred_check_branch
      %86 = sbr.rel (0) target = $region29
    $region28: #{tpu_custom_call.1} parent=1 // pred_region
      %s88 = ssub.s32 256, 256
      %89 = vsyncadd [#allocation10], %s88
      %s90 = sshll.u32 [#allocation11], 4
      %s91 = int_to_ptr.vmem [resolvable:$true] %s90
      %96 = dma.hbm_to_vmem [thread:$0]  %s6, 256, %s91, [#allocation10], 64, 64, 4
    $region29: #{tpu_custom_call.1} parent=1 // pred_fallthru
      _
    // Predicated region
    $region30: #{tpu_custom_call.1} parent=1 // pred_check
      _
    $region31: #{tpu_custom_call.1} parent=1 // pred_check_branch
      %98 = sbr.rel (0) target = $region33
    $region32: #{tpu_custom_call.1} parent=1 // pred_region
      %s100 = ssub.s32 16, 16
      %101 = vsyncadd [#allocation13], %s100
      %s103 = sshll.u32 [#allocation12], 4
      %s104 = int_to_ptr.vmem [resolvable:$true] %s103
      %106 = dma.hbm_to_vmem [thread:$0]  %s7, 16, %s104, [#allocation13]
    $region33: #{tpu_custom_call.1} parent=1 // pred_fallthru
      _
    // Predicated region
    $region34: #{tpu_custom_call.1} parent=1 // pred_check
      _
    $region35: #{tpu_custom_call.1} parent=1 // pred_check_branch
      %108 = sbr.rel (0) target = $region37
    $region36: #{tpu_custom_call.1} parent=1 // pred_region
      _
    $region37: #{tpu_custom_call.1} parent=1 // pred_fallthru
      _
    // Predicated region
    $region38: #{tpu_custom_call.1} parent=1 // pred_check
      _
    $region39: #{tpu_custom_call.1} parent=1 // pred_check_branch
      %110 = sbr.rel (0) target = $region41
    $region40: #{tpu_custom_call.1} parent=1 // pred_region
      _
    $region41: #{tpu_custom_call.1} parent=1 // pred_fallthru
      _
    // Predicated region
    $region42: #{tpu_custom_call.1} parent=1 // pred_check
      _
    $region43: #{tpu_custom_call.1} parent=1 // pred_check_branch
      %112 = sbr.rel (0) target = $region45
    $region44: #{tpu_custom_call.1} parent=1 // pred_region
      %s114 = ssub.s32 16, 16
      %115 = vsyncadd [#allocation13], %s114
      %s117 = sshll.u32 [#allocation14], 4
      %s118 = int_to_ptr.vmem [resolvable:$true] %s117
      %120 = dma.hbm_to_vmem [thread:$0]  %s10, 16, %s118, [#allocation13]
    $region45: #{tpu_custom_call.1} parent=1 // pred_fallthru
      _
    // Predicated region
    $region46: #{tpu_custom_call.1} parent=1 // pred_check
      _
    $region47: #{tpu_custom_call.1} parent=1 // pred_check_branch
      %122 = sbr.rel (0) target = $region49
    $region48: #{tpu_custom_call.1} parent=1 // pred_region
      %s124 = ssub.s32 256, 256
      %125 = vsyncadd [#allocation16], %s124
      %s126 = sshll.u32 [#allocation15], 4
      %s127 = int_to_ptr.vmem [resolvable:$true] %s126
      %132 = dma.hbm_to_vmem [thread:$0]  %s11, 256, %s127, [#allocation16], 64, 64, 4
    $region49: #{tpu_custom_call.1} parent=1 // pred_fallthru
      _
    // Predicated region
    $region50: #{tpu_custom_call.1} parent=1 // pred_check
      _
    $region51: #{tpu_custom_call.1} parent=1 // pred_check_branch
      %134 = sbr.rel (0) target = $region53
    $region52: #{tpu_custom_call.1} parent=1 // pred_region
      %s136 = ssub.s32 16, 16
      %137 = vsyncadd [#allocation16], %s136
      %s139 = sshll.u32 [#allocation17], 4
      %s140 = int_to_ptr.vmem [resolvable:$true] %s139
      %142 = dma.hbm_to_vmem [thread:$0]  %s12, 16, %s140, [#allocation16]
    $region53: #{tpu_custom_call.1} parent=1 // pred_fallthru
      _
    // Predicated region
    $region54: #{tpu_custom_call.1} parent=1 // pred_check
      _
    $region55: #{tpu_custom_call.1} parent=1 // pred_check_branch
      %144 = sbr.rel (0) target = $region57
    $region56: #{tpu_custom_call.1} parent=1 // pred_region
      _
    $region57: #{tpu_custom_call.1} parent=1 // pred_fallthru
      _
    // Predicated region
    $region58: #{tpu_custom_call.1} parent=1 // pred_check
      _
    $region59: #{tpu_custom_call.1} parent=1 // pred_check_branch
      %146 = sbr.rel (0) target = $region61
    $region60: #{tpu_custom_call.1} parent=1 // pred_region
      %s148 = ssub.s32 16, 16
      %149 = vsyncadd [#allocation19], %s148
      %s151 = sshll.u32 [#allocation18], 4
      %s152 = int_to_ptr.vmem [resolvable:$true] %s151
      %154 = dma.hbm_to_vmem [thread:$0]  %s14, 16, %s152, [#allocation19]
    $region61: #{tpu_custom_call.1} parent=1 // pred_fallthru
      _
    // Predicated region
    $region62: #{tpu_custom_call.1} parent=1 // pred_check
      _
    $region63: #{tpu_custom_call.1} parent=1 // pred_check_branch
      %156 = sbr.rel (0) target = $region65
    $region64: #{tpu_custom_call.1} parent=1 // pred_region
      %s158 = ssub.s32 256, 256
      %159 = vsyncadd [#allocation19], %s158
      %s160 = sshll.u32 [#allocation20], 4
      %s161 = int_to_ptr.vmem [resolvable:$true] %s160
      %166 = dma.hbm_to_vmem [thread:$0]  %s15, 256, %s161, [#allocation19], 64, 64, 4
    $region65: #{tpu_custom_call.1} parent=1 // pred_fallthru
      _
    // Predicated region
    $region66: #{tpu_custom_call.1} parent=1 // pred_check
      _
    $region67: #{tpu_custom_call.1} parent=1 // pred_check_branch
      %168 = sbr.rel (0) target = $region69
    $region68: #{tpu_custom_call.1} parent=1 // pred_region
      %s170 = ssub.s32 16, 16
      %171 = vsyncadd [#allocation22], %s170
      %s173 = sshll.u32 [#allocation21], 4
      %s174 = int_to_ptr.vmem [resolvable:$true] %s173
      %176 = dma.hbm_to_vmem [thread:$0]  %s16, 16, %s174, [#allocation22]
    $region69: #{tpu_custom_call.1} parent=1 // pred_fallthru
      _
    // Predicated region
    $region70: #{tpu_custom_call.1} parent=1 // pred_check
      _
    $region71: #{tpu_custom_call.1} parent=1 // pred_check_branch
      %178 = sbr.rel (0) target = $region73
    $region72: #{tpu_custom_call.1} parent=1 // pred_region
      _
    $region73: #{tpu_custom_call.1} parent=1 // pred_fallthru
      _
    // Predicated region
    $region74: #{tpu_custom_call.1} parent=1 // pred_check
      _
    $region75: #{tpu_custom_call.1} parent=1 // pred_check_branch
      %180 = sbr.rel (0) target = $region77
    $region76: #{tpu_custom_call.1} parent=1 // pred_region
      %s182 = ssub.s32 16, 16
      %183 = vsyncadd [#allocation22], %s182
      %s185 = sshll.u32 [#allocation23], 4
      %s186 = int_to_ptr.vmem [resolvable:$true] %s185
      %188 = dma.hbm_to_vmem [thread:$0]  %s18, 16, %s186, [#allocation22]
    $region77: #{tpu_custom_call.1} parent=1 // pred_fallthru
      _
    // Predicated region
    $region78: #{tpu_custom_call.1} parent=1 // pred_check
      _
    $region79: #{tpu_custom_call.1} parent=1 // pred_check_branch
      %190 = sbr.rel (0) target = $region81
    $region80: #{tpu_custom_call.1} parent=1 // pred_region
      %s192 = ssub.s32 256, 256
      %193 = vsyncadd [#allocation25], %s192
      %s194 = sshll.u32 [#allocation24], 4
      %s195 = int_to_ptr.vmem [resolvable:$true] %s194
      %200 = dma.hbm_to_vmem [thread:$0]  %s19, 256, %s195, [#allocation25], 64, 64, 4
    $region81: #{tpu_custom_call.1} parent=1 // pred_fallthru
      _
    // Predicated region
    $region82: #{tpu_custom_call.1} parent=1 // pred_check
      _
    $region83: #{tpu_custom_call.1} parent=1 // pred_check_branch
      %202 = sbr.rel (0) target = $region85
    $region84: #{tpu_custom_call.1} parent=1 // pred_region
      %s204 = ssub.s32 16, 16
      %205 = vsyncadd [#allocation25], %s204
      %s207 = sshll.u32 [#allocation26], 4
      %s208 = int_to_ptr.vmem [resolvable:$true] %s207
      %210 = dma.hbm_to_vmem [thread:$0]  %s20, 16, %s208, [#allocation25]
    $region85: #{tpu_custom_call.1} parent=1 // pred_fallthru
      _
    // Predicated region
    $region86: #{tpu_custom_call.1} parent=1 // pred_check
      _
    $region87: #{tpu_custom_call.1} parent=1 // pred_check_branch
      %212 = sbr.rel (0) target = $region89
    $region88: #{tpu_custom_call.1} parent=1 // pred_region
      _
    $region89: #{tpu_custom_call.1} parent=1 // pred_fallthru
      _
    // Predicated region
    $region90: #{tpu_custom_call.1} parent=1 // pred_check
      _
    $region91: #{tpu_custom_call.1} parent=1 // pred_check_branch
      %214 = sbr.rel (0) target = $region93
    $region92: #{tpu_custom_call.1} parent=1 // pred_region
      _
    $region93: #{tpu_custom_call.1} parent=1 // pred_fallthru
      _
    // Predicated region
    $region94: #{tpu_custom_call.1} parent=1 // pred_check
      _
    $region95: #{tpu_custom_call.1} parent=1 // pred_check_branch
      %216 = sbr.rel (0) target = $region97
    $region96: #{tpu_custom_call.1} parent=1 // pred_region
      %217 = dma.done [#allocation4], 512
    $region97: #{tpu_custom_call.1} parent=1 // pred_fallthru
      _
    // Predicated region
    $region98: #{tpu_custom_call.1} parent=1 // pred_check
      _
    $region99: #{tpu_custom_call.1} parent=1 // pred_check_branch
      %219 = sbr.rel (0) target = $region101
    $region100: #{tpu_custom_call.1} parent=1 // pred_region
      %220 = dma.done [#allocation7], 64
    $region101: #{tpu_custom_call.1} parent=1 // pred_fallthru
      _
    // Predicated region
    $region102: #{tpu_custom_call.1} parent=1 // pred_check
      _
    $region103: #{tpu_custom_call.1} parent=1 // pred_check_branch
      %222 = sbr.rel (0) target = $region105
    $region104: #{tpu_custom_call.1} parent=1 // pred_region
      %223 = dma.done [#allocation7], 256
    $region105: #{tpu_custom_call.1} parent=1 // pred_fallthru
      _
    // Predicated region
    $region106: #{tpu_custom_call.1} parent=1 // pred_check
      _
    $region107: #{tpu_custom_call.1} parent=1 // pred_check_branch
      %225 = sbr.rel (0) target = $region109
    $region108: #{tpu_custom_call.1} parent=1 // pred_region
      %226 = dma.done [#allocation10], 16
    $region109: #{tpu_custom_call.1} parent=1 // pred_fallthru
      _
    // Predicated region
    $region110: #{tpu_custom_call.1} parent=1 // pred_check
      _
    $region111: #{tpu_custom_call.1} parent=1 // pred_check_branch
      %228 = sbr.rel (0) target = $region113
    $region112: #{tpu_custom_call.1} parent=1 // pred_region
      %229 = dma.done [#allocation10], 256
    $region113: #{tpu_custom_call.1} parent=1 // pred_fallthru
      _
    // Predicated region
    $region114: #{tpu_custom_call.1} parent=1 // pred_check
      _
    $region115: #{tpu_custom_call.1} parent=1 // pred_check_branch
      %231 = sbr.rel (0) target = $region117
    $region116: #{tpu_custom_call.1} parent=1 // pred_region
      %232 = dma.done [#allocation13], 16
    $region117: #{tpu_custom_call.1} parent=1 // pred_fallthru
      _
    // Predicated region
    $region118: #{tpu_custom_call.1} parent=1 // pred_check
      _
    $region119: #{tpu_custom_call.1} parent=1 // pred_check_branch
      %234 = sbr.rel (0) target = $region121
    $region120: #{tpu_custom_call.1} parent=1 // pred_region
      %235 = dma.done [#allocation13], 16
    $region121: #{tpu_custom_call.1} parent=1 // pred_fallthru
      _
    // Predicated region
    $region122: #{tpu_custom_call.1} parent=1 // pred_check
      _
    $region123: #{tpu_custom_call.1} parent=1 // pred_check_branch
      %237 = sbr.rel (0) target = $region125
    $region124: #{tpu_custom_call.1} parent=1 // pred_region
      %238 = dma.done [#allocation16], 256
    $region125: #{tpu_custom_call.1} parent=1 // pred_fallthru
      _
    // Predicated region
    $region126: #{tpu_custom_call.1} parent=1 // pred_check
      _
    $region127: #{tpu_custom_call.1} parent=1 // pred_check_branch
      %240 = sbr.rel (0) target = $region129
    $region128: #{tpu_custom_call.1} parent=1 // pred_region
      %241 = dma.done [#allocation16], 16
    $region129: #{tpu_custom_call.1} parent=1 // pred_fallthru
      _
    // Predicated region
    $region130: #{tpu_custom_call.1} parent=1 // pred_check
      _
    $region131: #{tpu_custom_call.1} parent=1 // pred_check_branch
      %243 = sbr.rel (0) target = $region133
    $region132: #{tpu_custom_call.1} parent=1 // pred_region
      %244 = dma.done [#allocation19], 16
    $region133: #{tpu_custom_call.1} parent=1 // pred_fallthru
      _
    // Predicated region
    $region134: #{tpu_custom_call.1} parent=1 // pred_check
      _
    $region135: #{tpu_custom_call.1} parent=1 // pred_check_branch
      %246 = sbr.rel (0) target = $region137
    $region136: #{tpu_custom_call.1} parent=1 // pred_region
      %247 = dma.done [#allocation19], 256
    $region137: #{tpu_custom_call.1} parent=1 // pred_fallthru
      _
    // Predicated region
    $region138: #{tpu_custom_call.1} parent=1 // pred_check
      _
    $region139: #{tpu_custom_call.1} parent=1 // pred_check_branch
      %249 = sbr.rel (0) target = $region141
    $region140: #{tpu_custom_call.1} parent=1 // pred_region
      %250 = dma.done [#allocation22], 16
    $region141: #{tpu_custom_call.1} parent=1 // pred_fallthru
      _
    // Predicated region
    $region142: #{tpu_custom_call.1} parent=1 // pred_check
      _
    $region143: #{tpu_custom_call.1} parent=1 // pred_check_branch
      %252 = sbr.rel (0) target = $region145
    $region144: #{tpu_custom_call.1} parent=1 // pred_region
      %253 = dma.done [#allocation22], 16
    $region145: #{tpu_custom_call.1} parent=1 // pred_fallthru
      _
    // Predicated region
    $region146: #{tpu_custom_call.1} parent=1 // pred_check
      _
    $region147: #{tpu_custom_call.1} parent=1 // pred_check_branch
      %255 = sbr.rel (0) target = $region149
    $region148: #{tpu_custom_call.1} parent=1 // pred_region
      %256 = dma.done [#allocation25], 256
    $region149: #{tpu_custom_call.1} parent=1 // pred_fallthru
      _
    // Predicated region
    $region150: #{tpu_custom_call.1} parent=1 // pred_check
      _
    $region151: #{tpu_custom_call.1} parent=1 // pred_check_branch
      %258 = sbr.rel (0) target = $region153
    $region152: #{tpu_custom_call.1} parent=1 // pred_region
      %259 = dma.done [#allocation25], 16
    $region153: #{tpu_custom_call.1} parent=1 // pred_fallthru
      _
    %p261 = scmp.eq.s32.totalorder 0, 0
    // Predicated region
    $region154: #{tpu_custom_call.1} parent=1 // pred_check
      %p262 = pneg %p261
    $region155: #{tpu_custom_call.1} parent=1 // pred_check_branch
      %264 = sbr.rel (%p262) target = $region157
    $region156: #{tpu_custom_call.1} parent=1 // pred_region
      %v265 = vld [vmem:[#allocation3] sm:$0xf]
      %v266 = vld [vmem:[#allocation3 + $0x4] sm:$0xf]
      %v267 = vld [vmem:[#allocation3 + $0x8] sm:$0xf]
      %v268 = vld [vmem:[#allocation3 + $0xc] sm:$0xf]
      %v269 = vld [vmem:[#allocation3 + $0x10] sm:$0xf]
      %v270 = vld [vmem:[#allocation3 + $0x14] sm:$0xf]
      %v271 = vld [vmem:[#allocation3 + $0x18] sm:$0xf]
      %v272 = vld [vmem:[#allocation3 + $0x1c] sm:$0xf]
      %v273 = vld [vmem:[#allocation6] sm:$0xf]
      %v274 = vld [vmem:[#allocation11] sm:$0xf]
      %v275 = vld [vmem:[#allocation11 + $0x4] sm:$0xf]
      %v276 = vld [vmem:[#allocation11 + $0x8] sm:$0xf]
      %v277 = vld [vmem:[#allocation11 + $0xc] sm:$0xf]
      %v282 = vunpack.c.l.b16 %v274
      %v283 = vunpack.c.l.b16 %v275
      %v284 = vunpack.c.l.b16 %v276
      %v285 = vunpack.c.l.b16 %v277
      %v286 = vpack.c.b16 %v283, %v282
      %v287 = vpack.c.b16 %v285, %v284
      %vm290 = vcmask 261120
      %v292 = vsel %vm290, %v273, 0
      %294 = vmatprep.subr.bf16.mxu0 0
      %295 = vmatpush1.bf16.msra.mxu0 %v286
      %296 = vmatprep.subr.bf16.mxu0 0
      %297 = vmatpush1.bf16.msra.mxu0 %v287
      %298 = vmatprep.subr.bf16.mxu0 0
      %299 = vmatpush1.bf16.msra.mxu0 0
      %300 = vmatprep.subr.bf16.mxu0 0
      %301 = vmatpush1.bf16.msra.mxu0 0
      %302 = vmatprep.subr.bf16.mxu0 0
      %303 = vmatpush1.bf16.msra.mxu0 0
      %304 = vmatprep.subr.bf16.mxu0 0
      %305 = vmatpush1.bf16.msra.mxu0 0
      %306 = vmatprep.subr.bf16.mxu0 0
      %307 = vmatpush1.bf16.msra.mxu0 0
      %308 = vmatprep.subr.bf16.mxu0 0
      %309 = vmatpush1.bf16.msra.mxu0 0
      %310 = vmatprep.subr.bf16.mxu0 0
      %311 = vmatpush1.bf16.msra.mxu0 0
      %312 = vmatprep.subr.bf16.mxu0 0
      %313 = vmatpush1.bf16.msra.mxu0 0
      %314 = vmatprep.subr.bf16.mxu0 0
      %315 = vmatpush1.bf16.msra.mxu0 0
      %316 = vmatprep.subr.bf16.mxu0 0
      %317 = vmatpush1.bf16.msra.mxu0 0
      %318 = vmatprep.subr.bf16.mxu0 0
      %319 = vmatpush1.bf16.msra.mxu0 0
      %320 = vmatprep.subr.bf16.mxu0 0
      %321 = vmatpush1.bf16.msra.mxu0 0
      %322 = vmatprep.subr.bf16.mxu0 0
      %323 = vmatpush1.bf16.msra.mxu0 0
      %324 = vmatprep.subr.bf16.mxu0 0
      %325 = vmatpush1.bf16.msra.mxu0 0
      %326 = vmatprep.mubr.bf16.mxu0 0
      %327 = vmatmul.mubr.bf16.gmra.mrb[0].mxu0 %v292
      %v328 = vpop.f32.mrb[0].mxu0
      %v329 = vadd.f32 0.0, %v328
      %v330 = vpop.f32.mrb[0].mxu0
      %v331 = vpop.f32.mrb[0].mxu0
      %v332 = vpop.f32.mrb[0].mxu0
      %333 = vdwg.mxu0
      %v334 = vld [vmem:[%s5] sm:$0xf]
      %v335 = vld [vmem:[%s5 + $0x4] sm:$0xf]
      %v336 = vld [vmem:[%s5 + $0x8] sm:$0xf]
      %v337 = vld [vmem:[%s5 + $0xc] sm:$0xf]
      %v346 = vunpack.c.l.b16 %v265
      %v347 = vunpack.c.l.b16 %v266
      %v348 = vunpack.c.l.b16 %v267
      %v349 = vunpack.c.l.b16 %v268
      %v350 = vunpack.c.l.b16 %v269
      %v351 = vunpack.c.l.b16 %v270
      %v352 = vunpack.c.l.b16 %v271
      %v353 = vunpack.c.l.b16 %v272
      %v354 = vpack.c.b16 %v347, %v346
      %v355 = vpack.c.b16 %v349, %v348
      %v356 = vpack.c.b16 %v351, %v350
      %v357 = vpack.c.b16 %v353, %v352
      %v362 = vunpack.c.l.b16 %v334
      %v363 = vunpack.c.l.b16 %v335
      %v364 = vunpack.c.l.b16 %v336
      %v365 = vunpack.c.l.b16 %v337
      %v366 = vpack.c.b16 %v363, %v362
      %v367 = vpack.c.b16 %v365, %v364
      %v371 = vsel %vm290, %v354, 0
      %v374 = vsel %vm290, %v355, 0
      %v377 = vsel %vm290, %v356, 0
      %v380 = vsel %vm290, %v357, 0
      %382 = vmatprep.subr.bf16.mxu0 0
      %383 = vmatpush1.bf16.msra.mxu0 %v366
      %384 = vmatprep.subr.bf16.mxu0 0
      %385 = vmatpush1.bf16.msra.mxu0 %v367
      %386 = vmatprep.subr.bf16.mxu0 0
      %387 = vmatpush1.bf16.msra.mxu0 0
      %388 = vmatprep.subr.bf16.mxu0 0
      %389 = vmatpush1.bf16.msra.mxu0 0
      %390 = vmatprep.subr.bf16.mxu0 0
      %391 = vmatpush1.bf16.msra.mxu0 0
      %392 = vmatprep.subr.bf16.mxu0 0
      %393 = vmatpush1.bf16.msra.mxu0 0
      %394 = vmatprep.subr.bf16.mxu0 0
      %395 = vmatpush1.bf16.msra.mxu0 0
      %396 = vmatprep.subr.bf16.mxu0 0
      %397 = vmatpush1.bf16.msra.mxu0 0
      %398 = vmatprep.subr.bf16.mxu0 0
      %399 = vmatpush1.bf16.msra.mxu0 0
      %400 = vmatprep.subr.bf16.mxu0 0
      %401 = vmatpush1.bf16.msra.mxu0 0
      %402 = vmatprep.subr.bf16.mxu0 0
      %403 = vmatpush1.bf16.msra.mxu0 0
      %404 = vmatprep.subr.bf16.mxu0 0
      %405 = vmatpush1.bf16.msra.mxu0 0
      %406 = vmatprep.subr.bf16.mxu0 0
      %407 = vmatpush1.bf16.msra.mxu0 0
      %408 = vmatprep.subr.bf16.mxu0 0
      %409 = vmatpush1.bf16.msra.mxu0 0
      %410 = vmatprep.subr.bf16.mxu0 0
      %411 = vmatpush1.bf16.msra.mxu0 0
      %412 = vmatprep.subr.bf16.mxu0 0
      %413 = vmatpush1.bf16.msra.mxu0 0
      %414 = vmatprep.mubr.bf16.mxu0 0
      %415 = vmatmul.mubr.bf16.gmra.mrb[0].mxu0 %v371
      %v416 = vpop.f32.mrb[0].mxu0
      %v417 = vadd.f32 0.0, %v416
      %v418 = vpop.f32.mrb[0].mxu0
      %v419 = vpop.f32.mrb[0].mxu0
      %v420 = vadd.f32 0.0, %v419
      %v421 = vpop.f32.mrb[0].mxu0
      %422 = vmatprep.mubr.bf16.mxu0 0
      %423 = vmatmul.mubr.bf16.gmra.mrb[0].mxu0 %v374
      %v424 = vpop.f32.mrb[0].mxu0
      %v425 = vadd.f32 0.0, %v424
      %v426 = vpop.f32.mrb[0].mxu0
      %v427 = vpop.f32.mrb[0].mxu0
      %v428 = vadd.f32 0.0, %v427
      %v429 = vpop.f32.mrb[0].mxu0
      %430 = vmatprep.mubr.bf16.mxu0 0
      %431 = vmatmul.mubr.bf16.gmra.mrb[0].mxu0 %v377
      %v432 = vpop.f32.mrb[0].mxu0
      %v433 = vadd.f32 0.0, %v432
      %v434 = vpop.f32.mrb[0].mxu0
      %v435 = vpop.f32.mrb[0].mxu0
      %v436 = vadd.f32 0.0, %v435
      %v437 = vpop.f32.mrb[0].mxu0
      %438 = vmatprep.mubr.bf16.mxu0 0
      %439 = vmatmul.mubr.bf16.gmra.mrb[0].mxu0 %v380
      %v440 = vpop.f32.mrb[0].mxu0
      %v441 = vadd.f32 0.0, %v440
      %v442 = vpop.f32.mrb[0].mxu0
      %v443 = vpop.f32.mrb[0].mxu0
      %v444 = vadd.f32 0.0, %v443
      %v445 = vpop.f32.mrb[0].mxu0
      %446 = vdwg.mxu0
      %v448 = vcombine.high %v329, %v329
      %v450 = vunpack.c.l.s4 1966171168
      %v451 = vunpack.c.0.s8 %v450
      %v452 = vlaneseq
      %v453 = vshrl.u32 %v452, 7
      %v454 = vsub.s32 %v451, %v453
      %v455 = vrot.slane %v329, %v454
      %v457 = vunpack.c.l.s4 1966171168
      %v458 = vunpack.c.0.s8 %v457
      %v459 = vlaneseq
      %v460 = vshrl.u32 %v459, 7
      %v461 = vsub.s32 %v458, %v460
      %v462 = vrot.slane %v448, %v461
      %v463 = vcombine.high %v455, %v455
      %v464 = vcombine.high %v462, %v462
      %v466 = vunpack.c.l.s4 1966171168
      %v467 = vunpack.c.0.s8 %v466
      %v468 = vlaneseq
      %v469 = vshrl.u32 %v468, 7
      %v470 = vsub.s32 %v467, %v469
      %v471 = vrot.slane %v455, %v470
      %v473 = vunpack.c.l.s4 1966171168
      %v474 = vunpack.c.0.s8 %v473
      %v475 = vlaneseq
      %v476 = vshrl.u32 %v475, 7
      %v477 = vsub.s32 %v474, %v476
      %v478 = vrot.slane %v462, %v477
      %v480 = vunpack.c.l.s4 1966171168
      %v481 = vunpack.c.0.s8 %v480
      %v482 = vlaneseq
      %v483 = vshrl.u32 %v482, 7
      %v484 = vsub.s32 %v481, %v483
      %v485 = vrot.slane %v463, %v484
      %v487 = vunpack.c.l.s4 1966171168
      %v488 = vunpack.c.0.s8 %v487
      %v489 = vlaneseq
      %v490 = vshrl.u32 %v489, 7
      %v491 = vsub.s32 %v488, %v490
      %v492 = vrot.slane %v464, %v491
      %v493 = vcombine.high %v471, %v471
      %v494 = vcombine.high %v478, %v478
      %v495 = vcombine.high %v485, %v485
      %v496 = vcombine.high %v492, %v492
      %v497 = vlaneseq
      %v498 = vshrl.u32 %v497, 7
      %v499 = vsub.s32 0, %v498
      %v500 = vrot.slane %v471, %v499
      %v501 = vlaneseq
      %v502 = vshrl.u32 %v501, 7
      %v503 = vsub.s32 0, %v502
      %v504 = vrot.slane %v485, %v503
      %v505 = vlaneseq
      %v506 = vshrl.u32 %v505, 7
      %v507 = vsub.s32 0, %v506
      %v508 = vrot.slane %v493, %v507
      %v509 = vlaneseq
      %v510 = vshrl.u32 %v509, 7
      %v511 = vsub.s32 0, %v510
      %v512 = vrot.slane %v495, %v511
      %v513 = vlaneseq
      %v514 = vshrl.u32 %v513, 7
      %v515 = vsub.s32 0, %v514
      %v516 = vrot.slane %v478, %v515
      %v517 = vlaneseq
      %v518 = vshrl.u32 %v517, 7
      %v519 = vsub.s32 0, %v518
      %v520 = vrot.slane %v492, %v519
      %v521 = vlaneseq
      %v522 = vshrl.u32 %v521, 7
      %v523 = vsub.s32 0, %v522
      %v524 = vrot.slane %v494, %v523
      %v525 = vlaneseq
      %v526 = vshrl.u32 %v525, 7
      %v527 = vsub.s32 0, %v526
      %v528 = vrot.slane %v496, %v527
      %v537 = vadd.f32 %v417, %v500
      %v538 = vadd.f32 %v420, %v504
      %v539 = vadd.f32 %v425, %v508
      %v540 = vadd.f32 %v428, %v512
      %v541 = vadd.f32 %v433, %v516
      %v542 = vadd.f32 %v436, %v520
      %v543 = vadd.f32 %v441, %v524
      %v544 = vadd.f32 %v444, %v528
      %v545 = vld [vmem:[#allocation12] sm:$0x1]
      %v547 = vlaneseq
      %v548 = vshrl.u32 %v547, 7
      %v549 = vsub.s32 0, %v548
      %v550 = vrot.slane %v545, %v549
      %v552 = vadd.f32 %v537, %v550
      %v553 = vadd.f32 %v538, %v550
      %v554 = vadd.f32 %v539, %v550
      %v555 = vadd.f32 %v540, %v550
      %v556 = vadd.f32 %v541, %v550
      %v557 = vadd.f32 %v542, %v550
      %v558 = vadd.f32 %v543, %v550
      %v559 = vadd.f32 %v544, %v550
      %v560 = vxor.u32 %v552, 2147483648
      %v561 = vxor.u32 %v553, 2147483648
      %v562 = vxor.u32 %v554, 2147483648
      %v563 = vxor.u32 %v555, 2147483648
      %v564 = vxor.u32 %v556, 2147483648
      %v565 = vxor.u32 %v557, 2147483648
      %v566 = vxor.u32 %v558, 2147483648
      %v567 = vxor.u32 %v559, 2147483648
      %v568 = vmul.f32 %v560, 1.442695
      %v569 = vpow.pop %v568
      %v570 = vmul.f32 %v561, 1.442695
      %v571 = vpow.pop %v570
      %v572 = vmul.f32 %v562, 1.442695
      %v573 = vpow.pop %v572
      %v574 = vmul.f32 %v563, 1.442695
      %v575 = vpow.pop %v574
      %v576 = vmul.f32 %v564, 1.442695
      %v577 = vpow.pop %v576
      %v578 = vmul.f32 %v565, 1.442695
      %v579 = vpow.pop %v578
      %v580 = vmul.f32 %v566, 1.442695
      %v581 = vpow.pop %v580
      %v582 = vmul.f32 %v567, 1.442695
      %v583 = vpow.pop %v582
      %v584 = vadd.f32 %v569, 1.0
      %v585 = vadd.f32 %v571, 1.0
      %v586 = vadd.f32 %v573, 1.0
      %v587 = vadd.f32 %v575, 1.0
      %v588 = vadd.f32 %v577, 1.0
      %v589 = vadd.f32 %v579, 1.0
      %v590 = vadd.f32 %v581, 1.0
      %v591 = vadd.f32 %v583, 1.0
      %v592 = vrcp.pop %v584
      %v593 = vmul.f32 1.0, %v592
      %v594 = vrcp.pop %v585
      %v595 = vmul.f32 1.0, %v594
      %v596 = vrcp.pop %v586
      %v597 = vmul.f32 1.0, %v596
      %v598 = vrcp.pop %v587
      %v599 = vmul.f32 1.0, %v598
      %v600 = vrcp.pop %v588
      %v601 = vmul.f32 1.0, %v600
      %v602 = vrcp.pop %v589
      %v603 = vmul.f32 1.0, %v602
      %v604 = vrcp.pop %v590
      %v605 = vmul.f32 1.0, %v604
      %v606 = vrcp.pop %v591
      %v607 = vmul.f32 1.0, %v606
      %v608 = vld [vmem:[#allocation8] sm:$0xf]
      %v609 = vld [vmem:[#allocation8 + $0x4] sm:$0xf]
      %v610 = vld [vmem:[#allocation8 + $0x8] sm:$0xf]
      %v611 = vld [vmem:[#allocation8 + $0xc] sm:$0xf]
      %v616 = vunpack.c.l.b16 %v608
      %v617 = vunpack.c.l.b16 %v609
      %v618 = vunpack.c.l.b16 %v610
      %v619 = vunpack.c.l.b16 %v611
      %v620 = vpack.c.b16 %v617, %v616
      %v621 = vpack.c.b16 %v619, %v618
      %624 = vmatprep.subr.bf16.mxu0 0
      %625 = vmatpush1.bf16.msra.mxu0 %v620
      %626 = vmatprep.subr.bf16.mxu0 0
      %627 = vmatpush1.bf16.msra.mxu0 %v621
      %628 = vmatprep.subr.bf16.mxu0 0
      %629 = vmatpush1.bf16.msra.mxu0 0
      %630 = vmatprep.subr.bf16.mxu0 0
      %631 = vmatpush1.bf16.msra.mxu0 0
      %632 = vmatprep.subr.bf16.mxu0 0
      %633 = vmatpush1.bf16.msra.mxu0 0
      %634 = vmatprep.subr.bf16.mxu0 0
      %635 = vmatpush1.bf16.msra.mxu0 0
      %636 = vmatprep.subr.bf16.mxu0 0
      %637 = vmatpush1.bf16.msra.mxu0 0
      %638 = vmatprep.subr.bf16.mxu0 0
      %639 = vmatpush1.bf16.msra.mxu0 0
      %640 = vmatprep.subr.bf16.mxu0 0
      %641 = vmatpush1.bf16.msra.mxu0 0
      %642 = vmatprep.subr.bf16.mxu0 0
      %643 = vmatpush1.bf16.msra.mxu0 0
      %644 = vmatprep.subr.bf16.mxu0 0
      %645 = vmatpush1.bf16.msra.mxu0 0
      %646 = vmatprep.subr.bf16.mxu0 0
      %647 = vmatpush1.bf16.msra.mxu0 0
      %648 = vmatprep.subr.bf16.mxu0 0
      %649 = vmatpush1.bf16.msra.mxu0 0
      %650 = vmatprep.subr.bf16.mxu0 0
      %651 = vmatpush1.bf16.msra.mxu0 0
      %652 = vmatprep.subr.bf16.mxu0 0
      %653 = vmatpush1.bf16.msra.mxu0 0
      %654 = vmatprep.subr.bf16.mxu0 0
      %655 = vmatpush1.bf16.msra.mxu0 0
      %656 = vmatprep.mubr.bf16.mxu0 0
      %657 = vmatmul.mubr.bf16.gmra.mrb[0].mxu0 %v292
      %v658 = vpop.f32.mrb[0].mxu0
      %v659 = vadd.f32 0.0, %v658
      %v660 = vpop.f32.mrb[0].mxu0
      %v661 = vpop.f32.mrb[0].mxu0
      %v662 = vpop.f32.mrb[0].mxu0
      %663 = vdwg.mxu0
      %v664 = vld [vmem:[%s2] sm:$0xf]
      %v665 = vld [vmem:[%s2 + $0x4] sm:$0xf]
      %v666 = vld [vmem:[%s2 + $0x8] sm:$0xf]
      %v667 = vld [vmem:[%s2 + $0xc] sm:$0xf]
      %v672 = vunpack.c.l.b16 %v664
      %v673 = vunpack.c.l.b16 %v665
      %v674 = vunpack.c.l.b16 %v666
      %v675 = vunpack.c.l.b16 %v667
      %v676 = vpack.c.b16 %v673, %v672
      %v677 = vpack.c.b16 %v675, %v674
      %680 = vmatprep.subr.bf16.mxu0 0
      %681 = vmatpush1.bf16.msra.mxu0 %v676
      %682 = vmatprep.subr.bf16.mxu0 0
      %683 = vmatpush1.bf16.msra.mxu0 %v677
      %684 = vmatprep.subr.bf16.mxu0 0
      %685 = vmatpush1.bf16.msra.mxu0 0
      %686 = vmatprep.subr.bf16.mxu0 0
      %687 = vmatpush1.bf16.msra.mxu0 0
      %688 = vmatprep.subr.bf16.mxu0 0
      %689 = vmatpush1.bf16.msra.mxu0 0
      %690 = vmatprep.subr.bf16.mxu0 0
      %691 = vmatpush1.bf16.msra.mxu0 0
      %692 = vmatprep.subr.bf16.mxu0 0
      %693 = vmatpush1.bf16.msra.mxu0 0
      %694 = vmatprep.subr.bf16.mxu0 0
      %695 = vmatpush1.bf16.msra.mxu0 0
      %696 = vmatprep.subr.bf16.mxu0 0
      %697 = vmatpush1.bf16.msra.mxu0 0
      %698 = vmatprep.subr.bf16.mxu0 0
      %699 = vmatpush1.bf16.msra.mxu0 0
      %700 = vmatprep.subr.bf16.mxu0 0
      %701 = vmatpush1.bf16.msra.mxu0 0
      %702 = vmatprep.subr.bf16.mxu0 0
      %703 = vmatpush1.bf16.msra.mxu0 0
      %704 = vmatprep.subr.bf16.mxu0 0
      %705 = vmatpush1.bf16.msra.mxu0 0
      %706 = vmatprep.subr.bf16.mxu0 0
      %707 = vmatpush1.bf16.msra.mxu0 0
      %708 = vmatprep.subr.bf16.mxu0 0
      %709 = vmatpush1.bf16.msra.mxu0 0
      %710 = vmatprep.subr.bf16.mxu0 0
      %711 = vmatpush1.bf16.msra.mxu0 0
      %712 = vmatprep.mubr.bf16.mxu0 0
      %713 = vmatmul.mubr.bf16.gmra.mrb[0].mxu0 %v371
      %v714 = vpop.f32.mrb[0].mxu0
      %v715 = vadd.f32 0.0, %v714
      %v716 = vpop.f32.mrb[0].mxu0
      %v717 = vpop.f32.mrb[0].mxu0
      %v718 = vadd.f32 0.0, %v717
      %v719 = vpop.f32.mrb[0].mxu0
      %720 = vmatprep.mubr.bf16.mxu0 0
      %721 = vmatmul.mubr.bf16.gmra.mrb[0].mxu0 %v374
      %v722 = vpop.f32.mrb[0].mxu0
      %v723 = vadd.f32 0.0, %v722
      %v724 = vpop.f32.mrb[0].mxu0
      %v725 = vpop.f32.mrb[0].mxu0
      %v726 = vadd.f32 0.0, %v725
      %v727 = vpop.f32.mrb[0].mxu0
      %728 = vmatprep.mubr.bf16.mxu0 0
      %729 = vmatmul.mubr.bf16.gmra.mrb[0].mxu0 %v377
      %v730 = vpop.f32.mrb[0].mxu0
      %v731 = vadd.f32 0.0, %v730
      %v732 = vpop.f32.mrb[0].mxu0
      %v733 = vpop.f32.mrb[0].mxu0
      %v734 = vadd.f32 0.0, %v733
      %v735 = vpop.f32.mrb[0].mxu0
      %736 = vmatprep.mubr.bf16.mxu0 0
      %737 = vmatmul.mubr.bf16.gmra.mrb[0].mxu0 %v380
      %v738 = vpop.f32.mrb[0].mxu0
      %v739 = vadd.f32 0.0, %v738
      %v740 = vpop.f32.mrb[0].mxu0
      %v741 = vpop.f32.mrb[0].mxu0
      %v742 = vadd.f32 0.0, %v741
      %v743 = vpop.f32.mrb[0].mxu0
      %744 = vdwg.mxu0
      %v746 = vcombine.high %v659, %v659
      %v748 = vunpack.c.l.s4 1966171168
      %v749 = vunpack.c.0.s8 %v748
      %v750 = vlaneseq
      %v751 = vshrl.u32 %v750, 7
      %v752 = vsub.s32 %v749, %v751
      %v753 = vrot.slane %v659, %v752
      %v755 = vunpack.c.l.s4 1966171168
      %v756 = vunpack.c.0.s8 %v755
      %v757 = vlaneseq
      %v758 = vshrl.u32 %v757, 7
      %v759 = vsub.s32 %v756, %v758
      %v760 = vrot.slane %v746, %v759
      %v761 = vcombine.high %v753, %v753
      %v762 = vcombine.high %v760, %v760
      %v764 = vunpack.c.l.s4 1966171168
      %v765 = vunpack.c.0.s8 %v764
      %v766 = vlaneseq
      %v767 = vshrl.u32 %v766, 7
      %v768 = vsub.s32 %v765, %v767
      %v769 = vrot.slane %v753, %v768
      %v771 = vunpack.c.l.s4 1966171168
      %v772 = vunpack.c.0.s8 %v771
      %v773 = vlaneseq
      %v774 = vshrl.u32 %v773, 7
      %v775 = vsub.s32 %v772, %v774
      %v776 = vrot.slane %v760, %v775
      %v778 = vunpack.c.l.s4 1966171168
      %v779 = vunpack.c.0.s8 %v778
      %v780 = vlaneseq
      %v781 = vshrl.u32 %v780, 7
      %v782 = vsub.s32 %v779, %v781
      %v783 = vrot.slane %v761, %v782
      %v785 = vunpack.c.l.s4 1966171168
      %v786 = vunpack.c.0.s8 %v785
      %v787 = vlaneseq
      %v788 = vshrl.u32 %v787, 7
      %v789 = vsub.s32 %v786, %v788
      %v790 = vrot.slane %v762, %v789
      %v791 = vcombine.high %v769, %v769
      %v792 = vcombine.high %v776, %v776
      %v793 = vcombine.high %v783, %v783
      %v794 = vcombine.high %v790, %v790
      %v795 = vlaneseq
      %v796 = vshrl.u32 %v795, 7
      %v797 = vsub.s32 0, %v796
      %v798 = vrot.slane %v769, %v797
      %v799 = vlaneseq
      %v800 = vshrl.u32 %v799, 7
      %v801 = vsub.s32 0, %v800
      %v802 = vrot.slane %v783, %v801
      %v803 = vlaneseq
      %v804 = vshrl.u32 %v803, 7
      %v805 = vsub.s32 0, %v804
      %v806 = vrot.slane %v791, %v805
      %v807 = vlaneseq
      %v808 = vshrl.u32 %v807, 7
      %v809 = vsub.s32 0, %v808
      %v810 = vrot.slane %v793, %v809
      %v811 = vlaneseq
      %v812 = vshrl.u32 %v811, 7
      %v813 = vsub.s32 0, %v812
      %v814 = vrot.slane %v776, %v813
      %v815 = vlaneseq
      %v816 = vshrl.u32 %v815, 7
      %v817 = vsub.s32 0, %v816
      %v818 = vrot.slane %v790, %v817
      %v819 = vlaneseq
      %v820 = vshrl.u32 %v819, 7
      %v821 = vsub.s32 0, %v820
      %v822 = vrot.slane %v792, %v821
      %v823 = vlaneseq
      %v824 = vshrl.u32 %v823, 7
      %v825 = vsub.s32 0, %v824
      %v826 = vrot.slane %v794, %v825
      %v835 = vadd.f32 %v715, %v798
      %v836 = vadd.f32 %v718, %v802
      %v837 = vadd.f32 %v723, %v806
      %v838 = vadd.f32 %v726, %v810
      %v839 = vadd.f32 %v731, %v814
      %v840 = vadd.f32 %v734, %v818
      %v841 = vadd.f32 %v739, %v822
      %v842 = vadd.f32 %v742, %v826
      %v843 = vld [vmem:[#allocation9] sm:$0x1]
      %v845 = vlaneseq
      %v846 = vshrl.u32 %v845, 7
      %v847 = vsub.s32 0, %v846
      %v848 = vrot.slane %v843, %v847
      %v850 = vadd.f32 %v835, %v848
      %v851 = vadd.f32 %v836, %v848
      %v852 = vadd.f32 %v837, %v848
      %v853 = vadd.f32 %v838, %v848
      %v854 = vadd.f32 %v839, %v848
      %v855 = vadd.f32 %v840, %v848
      %v856 = vadd.f32 %v841, %v848
      %v857 = vadd.f32 %v842, %v848
      %v858 = vtanh.pop %v850
      %v859 = vtanh.pop %v851
      %v860 = vtanh.pop %v852
      %v861 = vtanh.pop %v853
      %v862 = vtanh.pop %v854
      %v863 = vtanh.pop %v855
      %v864 = vtanh.pop %v856
      %v865 = vtanh.pop %v857
      %v866 = vmul.f32 %v858, %v593
      %v867 = vmul.f32 %v859, %v595
      %v868 = vmul.f32 %v860, %v597
      %v869 = vmul.f32 %v861, %v599
      %v870 = vmul.f32 %v862, %v601
      %v871 = vmul.f32 %v863, %v603
      %v872 = vmul.f32 %v864, %v605
      %v873 = vmul.f32 %v865, %v607
      %v874 = vpack.c.bf16 %v867, %v866
      %v875 = vpack.c.bf16 %v869, %v868
      %v876 = vpack.c.bf16 %v871, %v870
      %v877 = vpack.c.bf16 %v873, %v872
      %v878 = vld [vmem:[%s8] sm:$0xf]
      %v879 = vld [vmem:[%s8 + $0x4] sm:$0xf]
      %v880 = vld [vmem:[%s8 + $0x8] sm:$0xf]
      %v881 = vld [vmem:[%s8 + $0xc] sm:$0xf]
      %v886 = vunpack.c.l.b16 %v878
      %v887 = vunpack.c.l.b16 %v879
      %v888 = vunpack.c.l.b16 %v880
      %v889 = vunpack.c.l.b16 %v881
      %v890 = vpack.c.b16 %v887, %v886
      %v891 = vpack.c.b16 %v889, %v888
      %v895 = vsel %vm290, %v874, 0
      %v898 = vsel %vm290, %v875, 0
      %v901 = vsel %vm290, %v876, 0
      %v904 = vsel %vm290, %v877, 0
      %906 = vmatprep.subr.bf16.mxu0 0
      %907 = vmatpush1.bf16.msra.mxu0 %v890
      %908 = vmatprep.subr.bf16.mxu0 0
      %909 = vmatpush1.bf16.msra.mxu0 %v891
      %910 = vmatprep.subr.bf16.mxu0 0
      %911 = vmatpush1.bf16.msra.mxu0 0
      %912 = vmatprep.subr.bf16.mxu0 0
      %913 = vmatpush1.bf16.msra.mxu0 0
      %914 = vmatprep.subr.bf16.mxu0 0
      %915 = vmatpush1.bf16.msra.mxu0 0
      %916 = vmatprep.subr.bf16.mxu0 0
      %917 = vmatpush1.bf16.msra.mxu0 0
      %918 = vmatprep.subr.bf16.mxu0 0
      %919 = vmatpush1.bf16.msra.mxu0 0
      %920 = vmatprep.subr.bf16.mxu0 0
      %921 = vmatpush1.bf16.msra.mxu0 0
      %922 = vmatprep.subr.bf16.mxu0 0
      %923 = vmatpush1.bf16.msra.mxu0 0
      %924 = vmatprep.subr.bf16.mxu0 0
      %925 = vmatpush1.bf16.msra.mxu0 0
      %926 = vmatprep.subr.bf16.mxu0 0
      %927 = vmatpush1.bf16.msra.mxu0 0
      %928 = vmatprep.subr.bf16.mxu0 0
      %929 = vmatpush1.bf16.msra.mxu0 0
      %930 = vmatprep.subr.bf16.mxu0 0
      %931 = vmatpush1.bf16.msra.mxu0 0
      %932 = vmatprep.subr.bf16.mxu0 0
      %933 = vmatpush1.bf16.msra.mxu0 0
      %934 = vmatprep.subr.bf16.mxu0 0
      %935 = vmatpush1.bf16.msra.mxu0 0
      %936 = vmatprep.subr.bf16.mxu0 0
      %937 = vmatpush1.bf16.msra.mxu0 0
      %938 = vmatprep.mubr.bf16.mxu0 0
      %939 = vmatmul.mubr.bf16.gmra.mrb[0].mxu0 %v895
      %v940 = vpop.f32.mrb[0].mxu0
      %v941 = vadd.f32 0.0, %v940
      %v942 = vpop.f32.mrb[0].mxu0
      %v943 = vpop.f32.mrb[0].mxu0
      %v944 = vadd.f32 0.0, %v943
      %v945 = vpop.f32.mrb[0].mxu0
      %946 = vmatprep.mubr.bf16.mxu0 0
      %947 = vmatmul.mubr.bf16.gmra.mrb[0].mxu0 %v898
      %v948 = vpop.f32.mrb[0].mxu0
      %v949 = vadd.f32 0.0, %v948
      %v950 = vpop.f32.mrb[0].mxu0
      %v951 = vpop.f32.mrb[0].mxu0
      %v952 = vadd.f32 0.0, %v951
      %v953 = vpop.f32.mrb[0].mxu0
      %954 = vmatprep.mubr.bf16.mxu0 0
      %955 = vmatmul.mubr.bf16.gmra.mrb[0].mxu0 %v901
      %v956 = vpop.f32.mrb[0].mxu0
      %v957 = vadd.f32 0.0, %v956
      %v958 = vpop.f32.mrb[0].mxu0
      %v959 = vpop.f32.mrb[0].mxu0
      %v960 = vadd.f32 0.0, %v959
      %v961 = vpop.f32.mrb[0].mxu0
      %962 = vmatprep.mubr.bf16.mxu0 0
      %963 = vmatmul.mubr.bf16.gmra.mrb[0].mxu0 %v904
      %v964 = vpop.f32.mrb[0].mxu0
      %v965 = vadd.f32 0.0, %v964
      %v966 = vpop.f32.mrb[0].mxu0
      %v967 = vpop.f32.mrb[0].mxu0
      %v968 = vadd.f32 0.0, %v967
      %v969 = vpop.f32.mrb[0].mxu0
      %970 = vdwg.mxu0
      %vm971 = vcmask 7168
      %v972 = vsel %vm971, %v941, -inf
      %v973 = vrot.slane %v972, 4
      %v974 = vmax.f32 %v972, %v973
      %v975 = vrot.slane %v974, 2
      %v976 = vmax.f32 %v974, %v975
      %v977 = vrot.slane %v976, 1
      %v978 = vmax.f32 %v976, %v977
      %v979 = vsel %vm971, %v944, -inf
      %v980 = vrot.slane %v979, 4
      %v981 = vmax.f32 %v979, %v980
      %v982 = vrot.slane %v981, 2
      %v983 = vmax.f32 %v981, %v982
      %v984 = vrot.slane %v983, 1
      %v985 = vmax.f32 %v983, %v984
      %v986 = vsel %vm971, %v949, -inf
      %v987 = vrot.slane %v986, 4
      %v988 = vmax.f32 %v986, %v987
      %v989 = vrot.slane %v988, 2
      %v990 = vmax.f32 %v988, %v989
      %v991 = vrot.slane %v990, 1
      %v992 = vmax.f32 %v990, %v991
      %v993 = vsel %vm971, %v952, -inf
      %v994 = vrot.slane %v993, 4
      %v995 = vmax.f32 %v993, %v994
      %v996 = vrot.slane %v995, 2
      %v997 = vmax.f32 %v995, %v996
      %v998 = vrot.slane %v997, 1
      %v999 = vmax.f32 %v997, %v998
      %v1000 = vsel %vm971, %v957, -inf
      %v1001 = vrot.slane %v1000, 4
      %v1002 = vmax.f32 %v1000, %v1001
      %v1003 = vrot.slane %v1002, 2
      %v1004 = vmax.f32 %v1002, %v1003
      %v1005 = vrot.slane %v1004, 1
      %v1006 = vmax.f32 %v1004, %v1005
      %v1007 = vsel %vm971, %v960, -inf
      %v1008 = vrot.slane %v1007, 4
      %v1009 = vmax.f32 %v1007, %v1008
      %v1010 = vrot.slane %v1009, 2
      %v1011 = vmax.f32 %v1009, %v1010
      %v1012 = vrot.slane %v1011, 1
      %v1013 = vmax.f32 %v1011, %v1012
      %v1014 = vsel %vm971, %v965, -inf
      %v1015 = vrot.slane %v1014, 4
      %v1016 = vmax.f32 %v1014, %v1015
      %v1017 = vrot.slane %v1016, 2
      %v1018 = vmax.f32 %v1016, %v1017
      %v1019 = vrot.slane %v1018, 1
      %v1020 = vmax.f32 %v1018, %v1019
      %v1021 = vsel %vm971, %v968, -inf
      %v1022 = vrot.slane %v1021, 4
      %v1023 = vmax.f32 %v1021, %v1022
      %v1024 = vrot.slane %v1023, 2
      %v1025 = vmax.f32 %v1023, %v1024
      %v1026 = vrot.slane %v1025, 1
      %v1027 = vmax.f32 %v1025, %v1026
      %v1028 = vsub.f32 %v941, %v978
      %v1029 = vsub.f32 %v944, %v985
      %v1030 = vsub.f32 %v949, %v992
      %v1031 = vsub.f32 %v952, %v999
      %v1032 = vsub.f32 %v957, %v1006
      %v1033 = vsub.f32 %v960, %v1013
      %v1034 = vsub.f32 %v965, %v1020
      %v1035 = vsub.f32 %v968, %v1027
      %v1036 = vmul.f32 %v1028, 1.442695
      %v1037 = vpow.pop %v1036
      %v1038 = vmul.f32 %v1029, 1.442695
      %v1039 = vpow.pop %v1038
      %v1040 = vmul.f32 %v1030, 1.442695
      %v1041 = vpow.pop %v1040
      %v1042 = vmul.f32 %v1031, 1.442695
      %v1043 = vpow.pop %v1042
      %v1044 = vmul.f32 %v1032, 1.442695
      %v1045 = vpow.pop %v1044
      %v1046 = vmul.f32 %v1033, 1.442695
      %v1047 = vpow.pop %v1046
      %v1048 = vmul.f32 %v1034, 1.442695
      %v1049 = vpow.pop %v1048
      %v1050 = vmul.f32 %v1035, 1.442695
      %v1051 = vpow.pop %v1050
      %v1052 = vsel %vm971, %v1037, 0.0
      %v1053 = vrot.slane %v1052, 4
      %v1054 = vadd.f32 %v1052, %v1053
      %v1055 = vrot.slane %v1054, 2
      %v1056 = vadd.f32 %v1054, %v1055
      %v1057 = vrot.slane %v1056, 1
      %v1058 = vadd.f32 %v1056, %v1057
      %v1059 = vsel %vm971, %v1039, 0.0
      %v1060 = vrot.slane %v1059, 4
      %v1061 = vadd.f32 %v1059, %v1060
      %v1062 = vrot.slane %v1061, 2
      %v1063 = vadd.f32 %v1061, %v1062
      %v1064 = vrot.slane %v1063, 1
      %v1065 = vadd.f32 %v1063, %v1064
      %v1066 = vsel %vm971, %v1041, 0.0
      %v1067 = vrot.slane %v1066, 4
      %v1068 = vadd.f32 %v1066, %v1067
      %v1069 = vrot.slane %v1068, 2
      %v1070 = vadd.f32 %v1068, %v1069
      %v1071 = vrot.slane %v1070, 1
      %v1072 = vadd.f32 %v1070, %v1071
      %v1073 = vsel %vm971, %v1043, 0.0
      %v1074 = vrot.slane %v1073, 4
      %v1075 = vadd.f32 %v1073, %v1074
      %v1076 = vrot.slane %v1075, 2
      %v1077 = vadd.f32 %v1075, %v1076
      %v1078 = vrot.slane %v1077, 1
      %v1079 = vadd.f32 %v1077, %v1078
      %v1080 = vsel %vm971, %v1045, 0.0
      %v1081 = vrot.slane %v1080, 4
      %v1082 = vadd.f32 %v1080, %v1081
      %v1083 = vrot.slane %v1082, 2
      %v1084 = vadd.f32 %v1082, %v1083
      %v1085 = vrot.slane %v1084, 1
      %v1086 = vadd.f32 %v1084, %v1085
      %v1087 = vsel %vm971, %v1047, 0.0
      %v1088 = vrot.slane %v1087, 4
      %v1089 = vadd.f32 %v1087, %v1088
      %v1090 = vrot.slane %v1089, 2
      %v1091 = vadd.f32 %v1089, %v1090
      %v1092 = vrot.slane %v1091, 1
      %v1093 = vadd.f32 %v1091, %v1092
      %v1094 = vsel %vm971, %v1049, 0.0
      %v1095 = vrot.slane %v1094, 4
      %v1096 = vadd.f32 %v1094, %v1095
      %v1097 = vrot.slane %v1096, 2
      %v1098 = vadd.f32 %v1096, %v1097
      %v1099 = vrot.slane %v1098, 1
      %v1100 = vadd.f32 %v1098, %v1099
      %v1101 = vsel %vm971, %v1051, 0.0
      %v1102 = vrot.slane %v1101, 4
      %v1103 = vadd.f32 %v1101, %v1102
      %v1104 = vrot.slane %v1103, 2
      %v1105 = vadd.f32 %v1103, %v1104
      %v1106 = vrot.slane %v1105, 1
      %v1107 = vadd.f32 %v1105, %v1106
      %v1108 = vrcp.pop %v1058
      %v1109 = vmul.f32 %v1037, %v1108
      %v1110 = vrcp.pop %v1065
      %v1111 = vmul.f32 %v1039, %v1110
      %v1112 = vrcp.pop %v1072
      %v1113 = vmul.f32 %v1041, %v1112
      %v1114 = vrcp.pop %v1079
      %v1115 = vmul.f32 %v1043, %v1114
      %v1116 = vrcp.pop %v1086
      %v1117 = vmul.f32 %v1045, %v1116
      %v1118 = vrcp.pop %v1093
      %v1119 = vmul.f32 %v1047, %v1118
      %v1120 = vrcp.pop %v1100
      %v1121 = vmul.f32 %v1049, %v1120
      %v1122 = vrcp.pop %v1107
      %v1123 = vmul.f32 %v1051, %v1122
      %v1124 = vunpack.c.l.bf16 %v265
      %v1125 = vunpack.c.l.bf16 %v266
      %v1126 = vunpack.c.l.bf16 %v267
      %v1127 = vunpack.c.l.bf16 %v268
      %v1128 = vunpack.c.l.bf16 %v269
      %v1129 = vunpack.c.l.bf16 %v270
      %v1130 = vunpack.c.l.bf16 %v271
      %v1131 = vunpack.c.l.bf16 %v272
      %1133 = vset.pattern.permute.xlu0 0
      %1134 = vperm.xlu0 %1133, %v1109
      %v1135 = vpop.permute.xlu0 %1134
      %1138 = vset.pattern.permute.xlu0 0
      %1139 = vperm.xlu0 %1138, %v1111
      %v1140 = vpop.permute.xlu0 %1139
      %1143 = vset.pattern.permute.xlu0 0
      %1144 = vperm.xlu0 %1143, %v1113
      %v1145 = vpop.permute.xlu0 %1144
      %1148 = vset.pattern.permute.xlu0 0
      %1149 = vperm.xlu0 %1148, %v1115
      %v1150 = vpop.permute.xlu0 %1149
      %1153 = vset.pattern.permute.xlu0 0
      %1154 = vperm.xlu0 %1153, %v1117
      %v1155 = vpop.permute.xlu0 %1154
      %1158 = vset.pattern.permute.xlu0 0
      %1159 = vperm.xlu0 %1158, %v1119
      %v1160 = vpop.permute.xlu0 %1159
      %1163 = vset.pattern.permute.xlu0 0
      %1164 = vperm.xlu0 %1163, %v1121
      %v1165 = vpop.permute.xlu0 %1164
      %1168 = vset.pattern.permute.xlu0 0
      %1169 = vperm.xlu0 %1168, %v1123
      %v1170 = vpop.permute.xlu0 %1169
      %v1172 = vmul.f32 %v1124, %v1135
      %v1173 = vmul.f32 %v1125, %v1140
      %v1174 = vmul.f32 %v1126, %v1145
      %v1175 = vmul.f32 %v1127, %v1150
      %v1176 = vmul.f32 %v1128, %v1155
      %v1177 = vmul.f32 %v1129, %v1160
      %v1178 = vmul.f32 %v1130, %v1165
      %v1179 = vmul.f32 %v1131, %v1170
      %v1180 = vsel %vm290, %v1172, 0.0
      %v1181 = vrot.slane %v1180, 4
      %v1182 = vadd.f32 %v1180, %v1181
      %v1183 = vrot.slane %v1182, 2
      %v1184 = vadd.f32 %v1182, %v1183
      %v1185 = vrot.slane %v1184, 1
      %v1186 = vadd.f32 %v1184, %v1185
      %v1187 = vsel %vm290, %v1173, 0.0
      %v1188 = vrot.slane %v1187, 4
      %v1189 = vadd.f32 %v1187, %v1188
      %v1190 = vrot.slane %v1189, 2
      %v1191 = vadd.f32 %v1189, %v1190
      %v1192 = vrot.slane %v1191, 1
      %v1193 = vadd.f32 %v1191, %v1192
      %v1194 = vsel %vm290, %v1174, 0.0
      %v1195 = vrot.slane %v1194, 4
      %v1196 = vadd.f32 %v1194, %v1195
      %v1197 = vrot.slane %v1196, 2
      %v1198 = vadd.f32 %v1196, %v1197
      %v1199 = vrot.slane %v1198, 1
      %v1200 = vadd.f32 %v1198, %v1199
      %v1201 = vsel %vm290, %v1175, 0.0
      %v1202 = vrot.slane %v1201, 4
      %v1203 = vadd.f32 %v1201, %v1202
      %v1204 = vrot.slane %v1203, 2
      %v1205 = vadd.f32 %v1203, %v1204
      %v1206 = vrot.slane %v1205, 1
      %v1207 = vadd.f32 %v1205, %v1206
      %v1208 = vsel %vm290, %v1176, 0.0
      %v1209 = vrot.slane %v1208, 4
      %v1210 = vadd.f32 %v1208, %v1209
      %v1211 = vrot.slane %v1210, 2
      %v1212 = vadd.f32 %v1210, %v1211
      %v1213 = vrot.slane %v1212, 1
      %v1214 = vadd.f32 %v1212, %v1213
      %v1215 = vsel %vm290, %v1177, 0.0
      %v1216 = vrot.slane %v1215, 4
      %v1217 = vadd.f32 %v1215, %v1216
      %v1218 = vrot.slane %v1217, 2
      %v1219 = vadd.f32 %v1217, %v1218
      %v1220 = vrot.slane %v1219, 1
      %v1221 = vadd.f32 %v1219, %v1220
      %v1222 = vsel %vm290, %v1178, 0.0
      %v1223 = vrot.slane %v1222, 4
      %v1224 = vadd.f32 %v1222, %v1223
      %v1225 = vrot.slane %v1224, 2
      %v1226 = vadd.f32 %v1224, %v1225
      %v1227 = vrot.slane %v1226, 1
      %v1228 = vadd.f32 %v1226, %v1227
      %v1229 = vsel %vm290, %v1179, 0.0
      %v1230 = vrot.slane %v1229, 4
      %v1231 = vadd.f32 %v1229, %v1230
      %v1232 = vrot.slane %v1231, 2
      %v1233 = vadd.f32 %v1231, %v1232
      %v1234 = vrot.slane %v1233, 1
      %v1235 = vadd.f32 %v1233, %v1234
      %v1236 = vld [vmem:[%s9] sm:$0xf]
      %v1237 = vld [vmem:[%s9 + $0x4] sm:$0xf]
      %v1238 = vld [vmem:[%s9 + $0x8] sm:$0xf]
      %v1239 = vld [vmem:[%s9 + $0xc] sm:$0xf]
      %v1240 = vld [vmem:[#allocation14] sm:$0x1]
      %v1241 = vld [vmem:[#allocation15] sm:$0xf]
      %v1242 = vld [vmem:[#allocation15 + $0x4] sm:$0xf]
      %v1243 = vld [vmem:[#allocation15 + $0x8] sm:$0xf]
      %v1244 = vld [vmem:[#allocation15 + $0xc] sm:$0xf]
      %v1245 = vld [vmem:[#allocation17] sm:$0x1]
      %v1247 = vlaneseq
      %v1248 = vshrl.u32 %v1247, 7
      %v1249 = vsub.s32 0, %v1248
      %v1250 = vrot.slane %v1240, %v1249
      %v1256 = vunpack.c.l.b16 %v1236
      %v1257 = vunpack.c.l.b16 %v1237
      %v1258 = vunpack.c.l.b16 %v1238
      %v1259 = vunpack.c.l.b16 %v1239
      %v1260 = vpack.c.b16 %v1257, %v1256
      %v1261 = vpack.c.b16 %v1259, %v1258
      %1264 = vmatprep.subr.bf16.mxu0 0
      %1265 = vmatpush1.bf16.msra.mxu0 %v1260
      %1266 = vmatprep.subr.bf16.mxu0 0
      %1267 = vmatpush1.bf16.msra.mxu0 %v1261
      %1268 = vmatprep.subr.bf16.mxu0 0
      %1269 = vmatpush1.bf16.msra.mxu0 0
      %1270 = vmatprep.subr.bf16.mxu0 0
      %1271 = vmatpush1.bf16.msra.mxu0 0
      %1272 = vmatprep.subr.bf16.mxu0 0
      %1273 = vmatpush1.bf16.msra.mxu0 0
      %1274 = vmatprep.subr.bf16.mxu0 0
      %1275 = vmatpush1.bf16.msra.mxu0 0
      %1276 = vmatprep.subr.bf16.mxu0 0
      %1277 = vmatpush1.bf16.msra.mxu0 0
      %1278 = vmatprep.subr.bf16.mxu0 0
      %1279 = vmatpush1.bf16.msra.mxu0 0
      %1280 = vmatprep.subr.bf16.mxu0 0
      %1281 = vmatpush1.bf16.msra.mxu0 0
      %1282 = vmatprep.subr.bf16.mxu0 0
      %1283 = vmatpush1.bf16.msra.mxu0 0
      %1284 = vmatprep.subr.bf16.mxu0 0
      %1285 = vmatpush1.bf16.msra.mxu0 0
      %1286 = vmatprep.subr.bf16.mxu0 0
      %1287 = vmatpush1.bf16.msra.mxu0 0
      %1288 = vmatprep.subr.bf16.mxu0 0
      %1289 = vmatpush1.bf16.msra.mxu0 0
      %1290 = vmatprep.subr.bf16.mxu0 0
      %1291 = vmatpush1.bf16.msra.mxu0 0
      %1292 = vmatprep.subr.bf16.mxu0 0
      %1293 = vmatpush1.bf16.msra.mxu0 0
      %1294 = vmatprep.subr.bf16.mxu0 0
      %1295 = vmatpush1.bf16.msra.mxu0 0
      %1296 = vmatprep.mubr.bf16.mxu0 0
      %1297 = vmatmul.mubr.bf16.gmra.mrb[0].mxu0 %v292
      %v1298 = vpop.f32.mrb[0].mxu0
      %v1299 = vadd.f32 %v1250, %v1298
      %v1300 = vpop.f32.mrb[0].mxu0
      %v1301 = vpop.f32.mrb[0].mxu0
      %v1302 = vpop.f32.mrb[0].mxu0
      %1303 = vdwg.mxu0
      %v1304 = vtanh.pop %v1299
      %v1306 = vlaneseq
      %v1307 = vshrl.u32 %v1306, 7
      %v1308 = vsub.s32 0, %v1307
      %v1309 = vrot.slane %v1245, %v1308
      %v1315 = vunpack.c.l.b16 %v1241
      %v1316 = vunpack.c.l.b16 %v1242
      %v1317 = vunpack.c.l.b16 %v1243
      %v1318 = vunpack.c.l.b16 %v1244
      %v1319 = vpack.c.b16 %v1316, %v1315
      %v1320 = vpack.c.b16 %v1318, %v1317
      %1323 = vmatprep.subr.bf16.mxu0 0
      %1324 = vmatpush1.bf16.msra.mxu0 %v1319
      %1325 = vmatprep.subr.bf16.mxu0 0
      %1326 = vmatpush1.bf16.msra.mxu0 %v1320
      %1327 = vmatprep.subr.bf16.mxu0 0
      %1328 = vmatpush1.bf16.msra.mxu0 0
      %1329 = vmatprep.subr.bf16.mxu0 0
      %1330 = vmatpush1.bf16.msra.mxu0 0
      %1331 = vmatprep.subr.bf16.mxu0 0
      %1332 = vmatpush1.bf16.msra.mxu0 0
      %1333 = vmatprep.subr.bf16.mxu0 0
      %1334 = vmatpush1.bf16.msra.mxu0 0
      %1335 = vmatprep.subr.bf16.mxu0 0
      %1336 = vmatpush1.bf16.msra.mxu0 0
      %1337 = vmatprep.subr.bf16.mxu0 0
      %1338 = vmatpush1.bf16.msra.mxu0 0
      %1339 = vmatprep.subr.bf16.mxu0 0
      %1340 = vmatpush1.bf16.msra.mxu0 0
      %1341 = vmatprep.subr.bf16.mxu0 0
      %1342 = vmatpush1.bf16.msra.mxu0 0
      %1343 = vmatprep.subr.bf16.mxu0 0
      %1344 = vmatpush1.bf16.msra.mxu0 0
      %1345 = vmatprep.subr.bf16.mxu0 0
      %1346 = vmatpush1.bf16.msra.mxu0 0
      %1347 = vmatprep.subr.bf16.mxu0 0
      %1348 = vmatpush1.bf16.msra.mxu0 0
      %1349 = vmatprep.subr.bf16.mxu0 0
      %1350 = vmatpush1.bf16.msra.mxu0 0
      %1351 = vmatprep.subr.bf16.mxu0 0
      %1352 = vmatpush1.bf16.msra.mxu0 0
      %1353 = vmatprep.subr.bf16.mxu0 0
      %1354 = vmatpush1.bf16.msra.mxu0 0
      %1355 = vmatprep.mubr.bf16.mxu0 0
      %1356 = vmatmul.mubr.bf16.gmra.mrb[0].mxu0 %v292
      %v1357 = vpop.f32.mrb[0].mxu0
      %v1358 = vadd.f32 %v1309, %v1357
      %v1359 = vpop.f32.mrb[0].mxu0
      %v1360 = vpop.f32.mrb[0].mxu0
      %v1361 = vpop.f32.mrb[0].mxu0
      %1362 = vdwg.mxu0
      %v1363 = vxor.u32 %v1358, 2147483648
      %v1364 = vmul.f32 %v1363, 1.442695
      %v1365 = vpow.pop %v1364
      %v1366 = vadd.f32 %v1365, 1.0
      %v1367 = vrcp.pop %v1366
      %v1368 = vmul.f32 1.0, %v1367
      %v1369 = vmul.f32 %v1304, %v1368
      %v1370 = vpack.c.bf16 %v1186, %v1186
      %v1371 = vpack.c.bf16 %v1193, %v1193
      %v1372 = vpack.c.bf16 %v1200, %v1200
      %v1373 = vpack.c.bf16 %v1207, %v1207
      %v1374 = vpack.c.bf16 %v1214, %v1214
      %v1375 = vpack.c.bf16 %v1221, %v1221
      %v1376 = vpack.c.bf16 %v1228, %v1228
      %v1377 = vpack.c.bf16 %v1235, %v1235
      %v1378 = vld [vmem:[%s13] sm:$0xf]
      %v1379 = vld [vmem:[%s13 + $0x4] sm:$0xf]
      %v1380 = vld [vmem:[%s13 + $0x8] sm:$0xf]
      %v1381 = vld [vmem:[%s13 + $0xc] sm:$0xf]
      %v1382 = vld [vmem:[#allocation18] sm:$0x1]
      %v1383 = vld [vmem:[#allocation20] sm:$0xf]
      %v1384 = vld [vmem:[#allocation20 + $0x4] sm:$0xf]
      %v1385 = vld [vmem:[#allocation20 + $0x8] sm:$0xf]
      %v1386 = vld [vmem:[#allocation20 + $0xc] sm:$0xf]
      %v1387 = vld [vmem:[#allocation21] sm:$0x1]
      %v1389 = vlaneseq
      %v1390 = vshrl.u32 %v1389, 7
      %v1391 = vsub.s32 0, %v1390
      %v1392 = vrot.slane %v1382, %v1391
      %v1402 = vunpack.c.l.b16 %v1370
      %v1403 = vunpack.c.l.b16 %v1371
      %v1404 = vunpack.c.l.b16 %v1372
      %v1405 = vunpack.c.l.b16 %v1373
      %v1406 = vunpack.c.l.b16 %v1374
      %v1407 = vunpack.c.l.b16 %v1375
      %v1408 = vunpack.c.l.b16 %v1376
      %v1409 = vunpack.c.l.b16 %v1377
      %vm1410 = vcmask 1041409
      %v1411 = vsel %vm1410, %v1403, %v1402
      %vm1412 = vcmask 1042434
      %v1413 = vsel %vm1412, %v1404, %v1411
      %vm1414 = vcmask 1043459
      %v1415 = vsel %vm1414, %v1405, %v1413
      %vm1416 = vcmask 1044484
      %v1417 = vsel %vm1416, %v1406, %v1415
      %vm1418 = vcmask 1045509
      %v1419 = vsel %vm1418, %v1407, %v1417
      %vm1420 = vcmask 1046534
      %v1421 = vsel %vm1420, %v1408, %v1419
      %vm1422 = vcmask 1047559
      %v1423 = vsel %vm1422, %v1409, %v1421
      %v1424 = vpack.c.b16 %v1423, %v1423
      %v1429 = vunpack.c.l.b16 %v1378
      %v1430 = vunpack.c.l.b16 %v1379
      %v1431 = vunpack.c.l.b16 %v1380
      %v1432 = vunpack.c.l.b16 %v1381
      %v1433 = vpack.c.b16 %v1430, %v1429
      %v1434 = vpack.c.b16 %v1432, %v1431
      %v1438 = vsel %vm290, %v1424, 0
      %1440 = vmatprep.subr.bf16.mxu0 0
      %1441 = vmatpush1.bf16.msra.mxu0 %v1433
      %1442 = vmatprep.subr.bf16.mxu0 0
      %1443 = vmatpush1.bf16.msra.mxu0 %v1434
      %1444 = vmatprep.subr.bf16.mxu0 0
      %1445 = vmatpush1.bf16.msra.mxu0 0
      %1446 = vmatprep.subr.bf16.mxu0 0
      %1447 = vmatpush1.bf16.msra.mxu0 0
      %1448 = vmatprep.subr.bf16.mxu0 0
      %1449 = vmatpush1.bf16.msra.mxu0 0
      %1450 = vmatprep.subr.bf16.mxu0 0
      %1451 = vmatpush1.bf16.msra.mxu0 0
      %1452 = vmatprep.subr.bf16.mxu0 0
      %1453 = vmatpush1.bf16.msra.mxu0 0
      %1454 = vmatprep.subr.bf16.mxu0 0
      %1455 = vmatpush1.bf16.msra.mxu0 0
      %1456 = vmatprep.subr.bf16.mxu0 0
      %1457 = vmatpush1.bf16.msra.mxu0 0
      %1458 = vmatprep.subr.bf16.mxu0 0
      %1459 = vmatpush1.bf16.msra.mxu0 0
      %1460 = vmatprep.subr.bf16.mxu0 0
      %1461 = vmatpush1.bf16.msra.mxu0 0
      %1462 = vmatprep.subr.bf16.mxu0 0
      %1463 = vmatpush1.bf16.msra.mxu0 0
      %1464 = vmatprep.subr.bf16.mxu0 0
      %1465 = vmatpush1.bf16.msra.mxu0 0
      %1466 = vmatprep.subr.bf16.mxu0 0
      %1467 = vmatpush1.bf16.msra.mxu0 0
      %1468 = vmatprep.subr.bf16.mxu0 0
      %1469 = vmatpush1.bf16.msra.mxu0 0
      %1470 = vmatprep.subr.bf16.mxu0 0
      %1471 = vmatpush1.bf16.msra.mxu0 0
      %1472 = vmatprep.mubr.bf16.mxu0 0
      %1473 = vmatmul.mubr.bf16.gmra.mrb[0].mxu0 %v1438
      %v1474 = vpop.f32.mrb[0].mxu0
      %v1475 = vadd.f32 %v1392, %v1474
      %v1476 = vpop.f32.mrb[0].mxu0
      %v1477 = vpop.f32.mrb[0].mxu0
      %v1478 = vpop.f32.mrb[0].mxu0
      %1479 = vdwg.mxu0
      %v1480 = vtanh.pop %v1475
      %v1482 = vlaneseq
      %v1483 = vshrl.u32 %v1482, 7
      %v1484 = vsub.s32 0, %v1483
      %v1485 = vrot.slane %v1387, %v1484
      %v1491 = vunpack.c.l.b16 %v1383
      %v1492 = vunpack.c.l.b16 %v1384
      %v1493 = vunpack.c.l.b16 %v1385
      %v1494 = vunpack.c.l.b16 %v1386
      %v1495 = vpack.c.b16 %v1492, %v1491
      %v1496 = vpack.c.b16 %v1494, %v1493
      %1499 = vmatprep.subr.bf16.mxu0 0
      %1500 = vmatpush1.bf16.msra.mxu0 %v1495
      %1501 = vmatprep.subr.bf16.mxu0 0
      %1502 = vmatpush1.bf16.msra.mxu0 %v1496
      %1503 = vmatprep.subr.bf16.mxu0 0
      %1504 = vmatpush1.bf16.msra.mxu0 0
      %1505 = vmatprep.subr.bf16.mxu0 0
      %1506 = vmatpush1.bf16.msra.mxu0 0
      %1507 = vmatprep.subr.bf16.mxu0 0
      %1508 = vmatpush1.bf16.msra.mxu0 0
      %1509 = vmatprep.subr.bf16.mxu0 0
      %1510 = vmatpush1.bf16.msra.mxu0 0
      %1511 = vmatprep.subr.bf16.mxu0 0
      %1512 = vmatpush1.bf16.msra.mxu0 0
      %1513 = vmatprep.subr.bf16.mxu0 0
      %1514 = vmatpush1.bf16.msra.mxu0 0
      %1515 = vmatprep.subr.bf16.mxu0 0
      %1516 = vmatpush1.bf16.msra.mxu0 0
      %1517 = vmatprep.subr.bf16.mxu0 0
      %1518 = vmatpush1.bf16.msra.mxu0 0
      %1519 = vmatprep.subr.bf16.mxu0 0
      %1520 = vmatpush1.bf16.msra.mxu0 0
      %1521 = vmatprep.subr.bf16.mxu0 0
      %1522 = vmatpush1.bf16.msra.mxu0 0
      %1523 = vmatprep.subr.bf16.mxu0 0
      %1524 = vmatpush1.bf16.msra.mxu0 0
      %1525 = vmatprep.subr.bf16.mxu0 0
      %1526 = vmatpush1.bf16.msra.mxu0 0
      %1527 = vmatprep.subr.bf16.mxu0 0
      %1528 = vmatpush1.bf16.msra.mxu0 0
      %1529 = vmatprep.subr.bf16.mxu0 0
      %1530 = vmatpush1.bf16.msra.mxu0 0
      %1531 = vmatprep.mubr.bf16.mxu0 0
      %1532 = vmatmul.mubr.bf16.gmra.mrb[0].mxu0 %v1438
      %v1533 = vpop.f32.mrb[0].mxu0
      %v1534 = vadd.f32 %v1485, %v1533
      %v1535 = vpop.f32.mrb[0].mxu0
      %v1536 = vpop.f32.mrb[0].mxu0
      %v1537 = vpop.f32.mrb[0].mxu0
      %1538 = vdwg.mxu0
      %v1539 = vxor.u32 %v1534, 2147483648
      %v1540 = vmul.f32 %v1539, 1.442695
      %v1541 = vpow.pop %v1540
      %v1542 = vadd.f32 %v1541, 1.0
      %v1543 = vrcp.pop %v1542
      %v1544 = vmul.f32 1.0, %v1543
      %v1545 = vmul.f32 %v1480, %v1544
      %v1546 = vmul.f32 %v1369, %v1545
      %v1547 = vpack.c.bf16 %v1546, %v1546
      %v1548 = vld [vmem:[%s17] sm:$0xf]
      %v1549 = vld [vmem:[%s17 + $0x4] sm:$0xf]
      %v1550 = vld [vmem:[%s17 + $0x8] sm:$0xf]
      %v1551 = vld [vmem:[%s17 + $0xc] sm:$0xf]
      %v1552 = vld [vmem:[#allocation23] sm:$0x1]
      %v1553 = vld [vmem:[#allocation24] sm:$0xf]
      %v1554 = vld [vmem:[#allocation24 + $0x4] sm:$0xf]
      %v1555 = vld [vmem:[#allocation24 + $0x8] sm:$0xf]
      %v1556 = vld [vmem:[#allocation24 + $0xc] sm:$0xf]
      %v1557 = vld [vmem:[#allocation26] sm:$0x1]
      %v1559 = vlaneseq
      %v1560 = vshrl.u32 %v1559, 7
      %v1561 = vsub.s32 0, %v1560
      %v1562 = vrot.slane %v1552, %v1561
      %v1568 = vunpack.c.l.b16 %v1548
      %v1569 = vunpack.c.l.b16 %v1549
      %v1570 = vunpack.c.l.b16 %v1550
      %v1571 = vunpack.c.l.b16 %v1551
      %v1572 = vpack.c.b16 %v1569, %v1568
      %v1573 = vpack.c.b16 %v1571, %v1570
      %v1577 = vsel %vm290, %v1547, 0
      %1579 = vmatprep.subr.bf16.mxu0 0
      %1580 = vmatpush1.bf16.msra.mxu0 %v1572
      %1581 = vmatprep.subr.bf16.mxu0 0
      %1582 = vmatpush1.bf16.msra.mxu0 %v1573
      %1583 = vmatprep.subr.bf16.mxu0 0
      %1584 = vmatpush1.bf16.msra.mxu0 0
      %1585 = vmatprep.subr.bf16.mxu0 0
      %1586 = vmatpush1.bf16.msra.mxu0 0
      %1587 = vmatprep.subr.bf16.mxu0 0
      %1588 = vmatpush1.bf16.msra.mxu0 0
      %1589 = vmatprep.subr.bf16.mxu0 0
      %1590 = vmatpush1.bf16.msra.mxu0 0
      %1591 = vmatprep.subr.bf16.mxu0 0
      %1592 = vmatpush1.bf16.msra.mxu0 0
      %1593 = vmatprep.subr.bf16.mxu0 0
      %1594 = vmatpush1.bf16.msra.mxu0 0
      %1595 = vmatprep.subr.bf16.mxu0 0
      %1596 = vmatpush1.bf16.msra.mxu0 0
      %1597 = vmatprep.subr.bf16.mxu0 0
      %1598 = vmatpush1.bf16.msra.mxu0 0
      %1599 = vmatprep.subr.bf16.mxu0 0
      %1600 = vmatpush1.bf16.msra.mxu0 0
      %1601 = vmatprep.subr.bf16.mxu0 0
      %1602 = vmatpush1.bf16.msra.mxu0 0
      %1603 = vmatprep.subr.bf16.mxu0 0
      %1604 = vmatpush1.bf16.msra.mxu0 0
      %1605 = vmatprep.subr.bf16.mxu0 0
      %1606 = vmatpush1.bf16.msra.mxu0 0
      %1607 = vmatprep.subr.bf16.mxu0 0
      %1608 = vmatpush1.bf16.msra.mxu0 0
      %1609 = vmatprep.subr.bf16.mxu0 0
      %1610 = vmatpush1.bf16.msra.mxu0 0
      %1611 = vmatprep.mubr.bf16.mxu0 0
      %1612 = vmatmul.mubr.bf16.gmra.mrb[0].mxu0 %v1577
      %v1613 = vpop.f32.mrb[0].mxu0
      %v1614 = vadd.f32 %v1562, %v1613
      %v1615 = vpop.f32.mrb[0].mxu0
      %v1616 = vpop.f32.mrb[0].mxu0
      %v1617 = vpop.f32.mrb[0].mxu0
      %1618 = vdwg.mxu0
      %v1619 = vtanh.pop %v1614
      %v1621 = vlaneseq
      %v1622 = vshrl.u32 %v1621, 7
      %v1623 = vsub.s32 0, %v1622
      %v1624 = vrot.slane %v1557, %v1623
      %v1630 = vunpack.c.l.b16 %v1553
      %v1631 = vunpack.c.l.b16 %v1554
      %v1632 = vunpack.c.l.b16 %v1555
      %v1633 = vunpack.c.l.b16 %v1556
      %v1634 = vpack.c.b16 %v1631, %v1630
      %v1635 = vpack.c.b16 %v1633, %v1632
      %1638 = vmatprep.subr.bf16.mxu0 0
      %1639 = vmatpush1.bf16.msra.mxu0 %v1634
      %1640 = vmatprep.subr.bf16.mxu0 0
      %1641 = vmatpush1.bf16.msra.mxu0 %v1635
      %1642 = vmatprep.subr.bf16.mxu0 0
      %1643 = vmatpush1.bf16.msra.mxu0 0
      %1644 = vmatprep.subr.bf16.mxu0 0
      %1645 = vmatpush1.bf16.msra.mxu0 0
      %1646 = vmatprep.subr.bf16.mxu0 0
      %1647 = vmatpush1.bf16.msra.mxu0 0
      %1648 = vmatprep.subr.bf16.mxu0 0
      %1649 = vmatpush1.bf16.msra.mxu0 0
      %1650 = vmatprep.subr.bf16.mxu0 0
      %1651 = vmatpush1.bf16.msra.mxu0 0
      %1652 = vmatprep.subr.bf16.mxu0 0
      %1653 = vmatpush1.bf16.msra.mxu0 0
      %1654 = vmatprep.subr.bf16.mxu0 0
      %1655 = vmatpush1.bf16.msra.mxu0 0
      %1656 = vmatprep.subr.bf16.mxu0 0
      %1657 = vmatpush1.bf16.msra.mxu0 0
      %1658 = vmatprep.subr.bf16.mxu0 0
      %1659 = vmatpush1.bf16.msra.mxu0 0
      %1660 = vmatprep.subr.bf16.mxu0 0
      %1661 = vmatpush1.bf16.msra.mxu0 0
      %1662 = vmatprep.subr.bf16.mxu0 0
      %1663 = vmatpush1.bf16.msra.mxu0 0
      %1664 = vmatprep.subr.bf16.mxu0 0
      %1665 = vmatpush1.bf16.msra.mxu0 0
      %1666 = vmatprep.subr.bf16.mxu0 0
      %1667 = vmatpush1.bf16.msra.mxu0 0
      %1668 = vmatprep.subr.bf16.mxu0 0
      %1669 = vmatpush1.bf16.msra.mxu0 0
      %1670 = vmatprep.mubr.bf16.mxu0 0
      %1671 = vmatmul.mubr.bf16.gmra.mrb[0].mxu0 %v1577
      %v1672 = vpop.f32.mrb[0].mxu0
      %v1673 = vadd.f32 %v1624, %v1672
      %v1674 = vpop.f32.mrb[0].mxu0
      %v1675 = vpop.f32.mrb[0].mxu0
      %v1676 = vpop.f32.mrb[0].mxu0
      %1677 = vdwg.mxu0
      %v1678 = vxor.u32 %v1673, 2147483648
      %v1679 = vmul.f32 %v1678, 1.442695
      %v1680 = vpow.pop %v1679
      %v1681 = vadd.f32 %v1680, 1.0
      %v1682 = vrcp.pop %v1681
      %v1683 = vmul.f32 1.0, %v1682
      %v1684 = vmul.f32 %v1619, %v1683
      %1685 = vst.msk [vmem:[#allocation2] sm:$0xff] %vm290, %v1684
    $region157: #{tpu_custom_call.1} parent=1 // pred_fallthru
      _
    %v1686 = vld [vmem:[#allocation2] sm:$0xff]
    %v1687 = vpack.c.bf16 %v1686, %v1686
    %v1688 = vld [vmem:[%s21] sm:$0xf]
    %v1689 = vld [vmem:[%s21 + $0x4] sm:$0xf]
    %v1690 = vld [vmem:[%s21 + $0x8] sm:$0xf]
    %v1691 = vld [vmem:[%s21 + $0xc] sm:$0xf]
    %v1692 = vld [vmem:[%s22] sm:$0x1]
    %v1694 = vlaneseq
    %v1695 = vshrl.u32 %v1694, 7
    %v1696 = vsub.s32 0, %v1695
    %v1697 = vrot.slane %v1692, %v1696
    %v1703 = vunpack.c.l.b16 %v1688
    %v1704 = vunpack.c.l.b16 %v1689
    %v1705 = vunpack.c.l.b16 %v1690
    %v1706 = vunpack.c.l.b16 %v1691
    %v1707 = vpack.c.b16 %v1704, %v1703
    %v1708 = vpack.c.b16 %v1706, %v1705
    %vm1711 = vcmask 261120
    %v1713 = vsel %vm1711, %v1687, 0
    %1715 = vmatprep.subr.bf16.mxu0 0
    %1716 = vmatpush1.bf16.msra.mxu0 %v1707
    %1717 = vmatprep.subr.bf16.mxu0 0
    %1718 = vmatpush1.bf16.msra.mxu0 %v1708
    %1719 = vmatprep.subr.bf16.mxu0 0
    %1720 = vmatpush1.bf16.msra.mxu0 0
    %1721 = vmatprep.subr.bf16.mxu0 0
    %1722 = vmatpush1.bf16.msra.mxu0 0
    %1723 = vmatprep.subr.bf16.mxu0 0
    %1724 = vmatpush1.bf16.msra.mxu0 0
    %1725 = vmatprep.subr.bf16.mxu0 0
    %1726 = vmatpush1.bf16.msra.mxu0 0
    %1727 = vmatprep.subr.bf16.mxu0 0
    %1728 = vmatpush1.bf16.msra.mxu0 0
    %1729 = vmatprep.subr.bf16.mxu0 0
    %1730 = vmatpush1.bf16.msra.mxu0 0
    %1731 = vmatprep.subr.bf16.mxu0 0
    %1732 = vmatpush1.bf16.msra.mxu0 0
    %1733 = vmatprep.subr.bf16.mxu0 0
    %1734 = vmatpush1.bf16.msra.mxu0 0
    %1735 = vmatprep.subr.bf16.mxu0 0
    %1736 = vmatpush1.bf16.msra.mxu0 0
    %1737 = vmatprep.subr.bf16.mxu0 0
    %1738 = vmatpush1.bf16.msra.mxu0 0
    %1739 = vmatprep.subr.bf16.mxu0 0
    %1740 = vmatpush1.bf16.msra.mxu0 0
    %1741 = vmatprep.subr.bf16.mxu0 0
    %1742 = vmatpush1.bf16.msra.mxu0 0
    %1743 = vmatprep.subr.bf16.mxu0 0
    %1744 = vmatpush1.bf16.msra.mxu0 0
    %1745 = vmatprep.subr.bf16.mxu0 0
    %1746 = vmatpush1.bf16.msra.mxu0 0
    %1747 = vmatprep.mubr.bf16.mxu0 0
    %1748 = vmatmul.mubr.bf16.gmra.mrb[0].mxu0 %v1713
    %v1749 = vpop.f32.mrb[0].mxu0
    %v1750 = vadd.f32 %v1697, %v1749
    %v1751 = vpop.f32.mrb[0].mxu0
    %v1752 = vpop.f32.mrb[0].mxu0
    %v1753 = vpop.f32.mrb[0].mxu0
    %1754 = vdwg.mxu0
    %1755 = vst [vmem:[#allocation27] sm:$0xff] %v1750
    // Predicated region
    $region158: #{tpu_custom_call.1} parent=1 // pred_check
      _
    $region159: #{tpu_custom_call.1} parent=1 // pred_check_branch
      %1757 = sbr.rel (0) target = $region161
    $region160: #{tpu_custom_call.1} parent=1 // pred_region
      %s1759 = ssub.s32 128, 128
      %1760 = vsyncadd [#allocation5], %s1759
      %s1762 = sshll.u32 [#allocation27], 4
      %s1763 = int_to_ptr.vmem [resolvable:$true] %s1762
      %1765 = dma.vmem_to_hbm [thread:$0]  %s1763, 128, %s23, [#allocation5]
    $region161: #{tpu_custom_call.1} parent=1 // pred_fallthru
      _
    // Predicated region
    $region162: #{tpu_custom_call.1} parent=1 // pred_check
      _
    $region163: #{tpu_custom_call.1} parent=1 // pred_check_branch
      %1767 = sbr.rel (0) target = $region165
    $region164: #{tpu_custom_call.1} parent=1 // pred_region
      %1768 = dma.done [#allocation5], 128
    $region165: #{tpu_custom_call.1} parent=1 // pred_fallthru
      _
    %1769 = vsyncpa [#allocation4], 1
    %1770 = vsyncpa [#allocation7], 1
    %1771 = vsyncpa [#allocation10], 1
    %1772 = vsyncpa [#allocation13], 1
    %1773 = vsyncpa [#allocation16], 1
    %1774 = vsyncpa [#allocation19], 1
    %1775 = vsyncpa [#allocation22], 1
    %1776 = vsyncpa [#allocation25], 1
    %1777 = vsyncpa [#allocation5], 1

</llo_original>
